<compile_context>
chip_gen: v5e
topology: v5e:2x2
jax: 0.10.0
libtpu: 0.0.40
codegen_flags: <defaults>
</compile_context>

<pallas_src>
import functools
import math

import jax
import jax.numpy as jnp
from jax.experimental import pallas as pl
from jax.experimental.pallas import tpu as pltpu


# Tap offsets (dh, dw) of a 3x3 convolution in (kh, kw) row-major order.
# Tap index t = kh*3 + kw matches the weight flattening done in the wrapper.
_TAPS = tuple((kh - 1, kw - 1) for kh in range(3) for kw in range(3))


def _residual_block_kernel(x_ref, mask_ref, w1_ref, b1_ref, w2_ref, b2_ref,
                           o_ref, *, W):
    """One batch element per grid step.

    x_ref:    (1, C, HWp)  input image, H*W flattened onto the lane axis
    mask_ref: (9, HWp)     per-tap validity mask (1.0 inside image, 0.0 at halo)
    w1_ref:   (9, C, C)    conv1 weights; w1_ref[t] = weight[:, :, kh, kw]
    b1_ref:   (C, 1)       conv1 bias
    w2_ref:   (9, C, C)    conv2 weights
    b2_ref:   (C, 1)       conv2 bias
    o_ref:    (1, C, HWp)  output image
    """
    C = x_ref.shape[1]
    HWp = x_ref.shape[2]

    x = x_ref[0]               # (C, HWp), f32
    mask = mask_ref[...]       # (9, HWp), f32

    def conv3x3(inp, w_ref, b_ref):
        # 9 shifted multiply-accumulate tap GEMMs (K = C_in), accumulated in f32.
        # No im2col temporary is materialized.
        acc = jnp.zeros((C, HWp), jnp.float32)
        for t, (dh, dw) in enumerate(_TAPS):
            d = dh * W + dw                       # flat offset of the source pixel
            if d == 0:
                src = inp
            else:
                # shifted[i] = inp[i + d] (lane rotation on the XLU).
                src = pltpu.roll(inp, shift=(-d) % HWp, axis=1)
            # Zero contributions whose source pixel falls outside the image
            # (implements the conv's zero padding; also kills lane-wraparound).
            src = src * mask[t:t + 1, :]
            acc = acc + jnp.dot(w_ref[t], src,
                                preferred_element_type=jnp.float32)
        return acc + b_ref[...]                   # bias broadcast along lanes

    y = jnp.maximum(conv3x3(x, w1_ref, b1_ref), 0.0)   # conv1 + ReLU
    y = conv3x3(y, w2_ref, b2_ref)                     # conv2 + bias
    o_ref[0] = jnp.maximum(x + y, 0.0)                 # residual add + ReLU


def residual_block(x_nchw, params):
    """Forward pass matching the PyTorch ResidualBlock. Input/output are NCHW."""
    w1, b1, w2, b2 = params                      # OIHW weights, (C,) biases
    B, C, H, W = x_nchw.shape
    HW = H * W
    HWp = ((HW + 127) // 128) * 128              # lane-dense flattened spatial axis

    # Layout glue is reshape-only: NCHW (B, C, H, W) -> (B, C, H*W). No transpose,
    # no channel padding, no spatial padding round-trips through HBM.
    x_flat = x_nchw.astype(jnp.float32).reshape(B, C, HW)
    if HWp != HW:
        x_flat = jnp.pad(x_flat, ((0, 0), (0, 0), (0, HWp - HW)))

    # Per-tap validity masks (the conv's zero-padding halo), shape (9, HWp).
    hh = jnp.arange(H)[:, None]
    ww = jnp.arange(W)[None, :]
    mask_rows = []
    for dh, dw in _TAPS:
        valid = ((hh + dh >= 0) & (hh + dh < H) &
                 (ww + dw >= 0) & (ww + dw < W))
        mask_rows.append(valid.astype(jnp.float32).reshape(HW))
    mask = jnp.stack(mask_rows, axis=0)
    if HWp != HW:
        mask = jnp.pad(mask, ((0, 0), (0, HWp - HW)))

    # Weights (C_out, C_in, 3, 3) -> per-tap matrices (9, C_out, C_in); bias -> (C, 1).
    w1_t = jnp.transpose(w1, (2, 3, 0, 1)).reshape(9, C, C).astype(jnp.float32)
    w2_t = jnp.transpose(w2, (2, 3, 0, 1)).reshape(9, C, C).astype(jnp.float32)
    b1_c = b1.reshape(C, 1).astype(jnp.float32)
    b2_c = b2.reshape(C, 1).astype(jnp.float32)

    kernel = functools.partial(_residual_block_kernel, W=W)

    # Invariant operands: constant index_map + single VMEM buffer (fetched once).
    invariant = dict(pipeline_mode=pl.Buffered(1))

    out_flat = pl.pallas_call(
        kernel,
        out_shape=jax.ShapeDtypeStruct((B, C, HWp), jnp.float32),
        grid_spec=pltpu.PrefetchScalarGridSpec(
            num_scalar_prefetch=0,
            grid=(B,),   # ~4 KiB per-image blocks: DMA fully overlaps compute;
                         # tile the H*W lane axis instead for large images.
            in_specs=[
                pl.BlockSpec((1, C, HWp), lambda b: (b, 0, 0)),
                pl.BlockSpec((9, HWp), lambda b: (0, 0), **invariant),
                pl.BlockSpec((9, C, C), lambda b: (0, 0, 0), **invariant),
                pl.BlockSpec((C, 1), lambda b: (0, 0), **invariant),
                pl.BlockSpec((9, C, C), lambda b: (0, 0, 0), **invariant),
                pl.BlockSpec((C, 1), lambda b: (0, 0), **invariant),
            ],
            out_specs=pl.BlockSpec((1, C, HWp), lambda b: (b, 0, 0)),
        ),
        # Total VMEM footprint here is ~tens of KiB, far under every
        # generation's limit (v7x 64 MiB physical), so no vmem_limit override.
        compiler_params=pltpu.CompilerParams(
            dimension_semantics=("parallel",),
        ),
    )(x_flat, mask, w1_t, b1_c, w2_t, b2_c)

    # Drop lane padding (no-op when H*W is already a multiple of 128) and
    # reshape back to NCHW — both free (no transpose).
    return out_flat[..., :HW].reshape(B, C, H, W)


def init_params(key, channels):
    """Deterministic init mimicking torch.nn.Conv2d defaults (uniform(-k, k), k=1/sqrt(fan_in))."""
    fan_in = channels * 3 * 3
    bound = 1.0 / math.sqrt(fan_in)
    k1, k2, k3, k4 = jax.random.split(key, 4)
    w1 = jax.random.uniform(k1, (channels, channels, 3, 3), jnp.float32, -bound, bound)
    b1 = jax.random.uniform(k2, (channels,), jnp.float32, -bound, bound)
    w2 = jax.random.uniform(k3, (channels, channels, 3, 3), jnp.float32, -bound, bound)
    b2 = jax.random.uniform(k4, (channels,), jnp.float32, -bound, bound)
    return (w1, b1, w2, b2)


def residual_block_reference(x_nchw, params):
    """Pure-JAX (XLA conv) reference for correctness checking."""
    w1, b1, w2, b2 = params
    dn = ("NCHW", "OIHW", "NCHW")
    y = jax.lax.conv_general_dilated(x_nchw, w1, (1, 1), "SAME", dimension_numbers=dn)
    y = jax.nn.relu(y + b1[None, :, None, None])
    y = jax.lax.conv_general_dilated(y, w2, (1, 1), "SAME", dimension_numbers=dn)
    y = y + b2[None, :, None, None]
    return jax.nn.relu(x_nchw + y)


if __name__ == "__main__":
    B, C, H, W = 2, 4, 16, 16
    key = jax.random.PRNGKey(0)
    kp, kx = jax.random.split(key)
    params = init_params(kp, C)
    x = jax.random.normal(kx, (B, C, H, W), jnp.float32)

    out = jax.block_until_ready(jax.jit(residual_block)(x, params))

    ref = jax.block_until_ready(residual_block_reference(x, params))
    assert out.shape == (B, C, H, W)
    assert jnp.allclose(out, ref, atol=1e-4, rtol=1e-4), "mismatch vs reference"

    print("KERNEL_OK")
</pallas_src>

<mosaic_0001>
module attributes {stable_mosaic.version = 11 : i64} {
  func.func @_residual_block_kernel(%arg0: i32, %arg1: memref<1x4x256xf32, #tpu.memory_space<vmem>>, %arg2: memref<9x256xf32, #tpu.memory_space<vmem>>, %arg3: memref<9x4x4xf32, #tpu.memory_space<vmem>>, %arg4: memref<4x1xf32, #tpu.memory_space<vmem>>, %arg5: memref<9x4x4xf32, #tpu.memory_space<vmem>>, %arg6: memref<4x1xf32, #tpu.memory_space<vmem>>, %arg7: memref<1x4x256xf32, #tpu.memory_space<vmem>>) attributes {dimension_semantics = [#tpu.dimension_semantics<parallel>], iteration_bounds = array<i64: 2>, scalar_prefetch = 0 : i64, scratch_operands = 0 : i64, tpu.core_type = #tpu.core_type<tc>, window_params = [{transform_indices = @transform_0, window_bounds = array<i64: 1, 4, 256>}, {pipeline_mode = #tpu.pipeline_mode<synchronous>, transform_indices = @transform_1, window_bounds = array<i64: 9, 256>}, {pipeline_mode = #tpu.pipeline_mode<synchronous>, transform_indices = @transform_2, window_bounds = array<i64: 9, 4, 4>}, {pipeline_mode = #tpu.pipeline_mode<synchronous>, transform_indices = @transform_3, window_bounds = array<i64: 4, 1>}, {pipeline_mode = #tpu.pipeline_mode<synchronous>, transform_indices = @transform_4, window_bounds = array<i64: 9, 4, 4>}, {pipeline_mode = #tpu.pipeline_mode<synchronous>, transform_indices = @transform_5, window_bounds = array<i64: 4, 1>}, {transform_indices = @transform_6, window_bounds = array<i64: 1, 4, 256>}]} {
    %c0 = arith.constant 0 : index
    %c0_0 = arith.constant 0 : index
    %c0_1 = arith.constant 0 : index
    %0 = vector.load %arg1[%c0, %c0_0, %c0_1] : memref<1x4x256xf32, #tpu.memory_space<vmem>>, vector<1x4x256xf32>
    %1 = vector.shape_cast %0 : vector<1x4x256xf32> to vector<4x256xf32>
    %c0_2 = arith.constant 0 : index
    %c0_3 = arith.constant 0 : index
    %2 = vector.load %arg2[%c0_2, %c0_3] : memref<9x256xf32, #tpu.memory_space<vmem>>, vector<9x256xf32>
    %cst = arith.constant 0.000000e+00 : f32
    %3 = vector.broadcast %cst : f32 to vector<4x256xf32>
    %c17_i32 = arith.constant 17 : i32
    %4 = tpu.dynamic_rotate %1 by %c17_i32 dim 1 : vector<4x256xf32>, i32 -> vector<4x256xf32>
    %5 = vector.extract_strided_slice %2 {offsets = [0, 0], sizes = [1, 256], strides = [1, 1]} : vector<9x256xf32> to vector<1x256xf32>
    %6 = vector.broadcast %5 : vector<1x256xf32> to vector<4x256xf32>
    %7 = arith.mulf %4, %6 : vector<4x256xf32>
    %c0_4 = arith.constant 0 : index
    %c0_5 = arith.constant 0 : index
    %c0_6 = arith.constant 0 : index
    %8 = vector.load %arg3[%c0_4, %c0_5, %c0_6] : memref<9x4x4xf32, #tpu.memory_space<vmem>>, vector<1x4x4xf32>
    %9 = vector.shape_cast %8 : vector<1x4x4xf32> to vector<4x4xf32>
    %cst_7 = arith.constant dense<0.000000e+00> : vector<4x256xf32>
    %10 = tpu.matmul %9, %7, %cst_7 {dimension_numbers = #tpu.dot_dimension_numbers<[1], [0], [0], [1], [0, 0, 1, 1], [], []>} : vector<4x4xf32>, vector<4x256xf32>, vector<4x256xf32> -> vector<4x256xf32>
    %11 = arith.addf %3, %10 : vector<4x256xf32>
    %c16_i32 = arith.constant 16 : i32
    %12 = tpu.dynamic_rotate %1 by %c16_i32 dim 1 : vector<4x256xf32>, i32 -> vector<4x256xf32>
    %13 = vector.extract_strided_slice %2 {offsets = [1, 0], sizes = [1, 256], strides = [1, 1]} : vector<9x256xf32> to vector<1x256xf32>
    %14 = vector.broadcast %13 : vector<1x256xf32> to vector<4x256xf32>
    %15 = arith.mulf %12, %14 : vector<4x256xf32>
    %c1 = arith.constant 1 : index
    %c0_8 = arith.constant 0 : index
    %c0_9 = arith.constant 0 : index
    %16 = vector.load %arg3[%c1, %c0_8, %c0_9] : memref<9x4x4xf32, #tpu.memory_space<vmem>>, vector<1x4x4xf32>
    %17 = vector.shape_cast %16 : vector<1x4x4xf32> to vector<4x4xf32>
    %cst_10 = arith.constant dense<0.000000e+00> : vector<4x256xf32>
    %18 = tpu.matmul %17, %15, %cst_10 {dimension_numbers = #tpu.dot_dimension_numbers<[1], [0], [0], [1], [0, 0, 1, 1], [], []>} : vector<4x4xf32>, vector<4x256xf32>, vector<4x256xf32> -> vector<4x256xf32>
    %19 = arith.addf %11, %18 : vector<4x256xf32>
    %c15_i32 = arith.constant 15 : i32
    %20 = tpu.dynamic_rotate %1 by %c15_i32 dim 1 : vector<4x256xf32>, i32 -> vector<4x256xf32>
    %21 = vector.extract_strided_slice %2 {offsets = [2, 0], sizes = [1, 256], strides = [1, 1]} : vector<9x256xf32> to vector<1x256xf32>
    %22 = vector.broadcast %21 : vector<1x256xf32> to vector<4x256xf32>
    %23 = arith.mulf %20, %22 : vector<4x256xf32>
    %c2 = arith.constant 2 : index
    %c0_11 = arith.constant 0 : index
    %c0_12 = arith.constant 0 : index
    %24 = vector.load %arg3[%c2, %c0_11, %c0_12] : memref<9x4x4xf32, #tpu.memory_space<vmem>>, vector<1x4x4xf32>
    %25 = vector.shape_cast %24 : vector<1x4x4xf32> to vector<4x4xf32>
    %cst_13 = arith.constant dense<0.000000e+00> : vector<4x256xf32>
    %26 = tpu.matmul %25, %23, %cst_13 {dimension_numbers = #tpu.dot_dimension_numbers<[1], [0], [0], [1], [0, 0, 1, 1], [], []>} : vector<4x4xf32>, vector<4x256xf32>, vector<4x256xf32> -> vector<4x256xf32>
    %27 = arith.addf %19, %26 : vector<4x256xf32>
    %c1_i32 = arith.constant 1 : i32
    %28 = tpu.dynamic_rotate %1 by %c1_i32 dim 1 : vector<4x256xf32>, i32 -> vector<4x256xf32>
    %29 = vector.extract_strided_slice %2 {offsets = [3, 0], sizes = [1, 256], strides = [1, 1]} : vector<9x256xf32> to vector<1x256xf32>
    %30 = vector.broadcast %29 : vector<1x256xf32> to vector<4x256xf32>
    %31 = arith.mulf %28, %30 : vector<4x256xf32>
    %c3 = arith.constant 3 : index
    %c0_14 = arith.constant 0 : index
    %c0_15 = arith.constant 0 : index
    %32 = vector.load %arg3[%c3, %c0_14, %c0_15] : memref<9x4x4xf32, #tpu.memory_space<vmem>>, vector<1x4x4xf32>
    %33 = vector.shape_cast %32 : vector<1x4x4xf32> to vector<4x4xf32>
    %cst_16 = arith.constant dense<0.000000e+00> : vector<4x256xf32>
    %34 = tpu.matmul %33, %31, %cst_16 {dimension_numbers = #tpu.dot_dimension_numbers<[1], [0], [0], [1], [0, 0, 1, 1], [], []>} : vector<4x4xf32>, vector<4x256xf32>, vector<4x256xf32> -> vector<4x256xf32>
    %35 = arith.addf %27, %34 : vector<4x256xf32>
    %36 = vector.extract_strided_slice %2 {offsets = [4, 0], sizes = [1, 256], strides = [1, 1]} : vector<9x256xf32> to vector<1x256xf32>
    %37 = vector.broadcast %36 : vector<1x256xf32> to vector<4x256xf32>
    %38 = arith.mulf %1, %37 : vector<4x256xf32>
    %c4 = arith.constant 4 : index
    %c0_17 = arith.constant 0 : index
    %c0_18 = arith.constant 0 : index
    %39 = vector.load %arg3[%c4, %c0_17, %c0_18] : memref<9x4x4xf32, #tpu.memory_space<vmem>>, vector<1x4x4xf32>
    %40 = vector.shape_cast %39 : vector<1x4x4xf32> to vector<4x4xf32>
    %cst_19 = arith.constant dense<0.000000e+00> : vector<4x256xf32>
    %41 = tpu.matmul %40, %38, %cst_19 {dimension_numbers = #tpu.dot_dimension_numbers<[1], [0], [0], [1], [0, 0, 1, 1], [], []>} : vector<4x4xf32>, vector<4x256xf32>, vector<4x256xf32> -> vector<4x256xf32>
    %42 = arith.addf %35, %41 : vector<4x256xf32>
    %c255_i32 = arith.constant 255 : i32
    %43 = tpu.dynamic_rotate %1 by %c255_i32 dim 1 : vector<4x256xf32>, i32 -> vector<4x256xf32>
    %44 = vector.extract_strided_slice %2 {offsets = [5, 0], sizes = [1, 256], strides = [1, 1]} : vector<9x256xf32> to vector<1x256xf32>
    %45 = vector.broadcast %44 : vector<1x256xf32> to vector<4x256xf32>
    %46 = arith.mulf %43, %45 : vector<4x256xf32>
    %c5 = arith.constant 5 : index
    %c0_20 = arith.constant 0 : index
    %c0_21 = arith.constant 0 : index
    %47 = vector.load %arg3[%c5, %c0_20, %c0_21] : memref<9x4x4xf32, #tpu.memory_space<vmem>>, vector<1x4x4xf32>
    %48 = vector.shape_cast %47 : vector<1x4x4xf32> to vector<4x4xf32>
    %cst_22 = arith.constant dense<0.000000e+00> : vector<4x256xf32>
    %49 = tpu.matmul %48, %46, %cst_22 {dimension_numbers = #tpu.dot_dimension_numbers<[1], [0], [0], [1], [0, 0, 1, 1], [], []>} : vector<4x4xf32>, vector<4x256xf32>, vector<4x256xf32> -> vector<4x256xf32>
    %50 = arith.addf %42, %49 : vector<4x256xf32>
    %c241_i32 = arith.constant 241 : i32
    %51 = tpu.dynamic_rotate %1 by %c241_i32 dim 1 : vector<4x256xf32>, i32 -> vector<4x256xf32>
    %52 = vector.extract_strided_slice %2 {offsets = [6, 0], sizes = [1, 256], strides = [1, 1]} : vector<9x256xf32> to vector<1x256xf32>
    %53 = vector.broadcast %52 : vector<1x256xf32> to vector<4x256xf32>
    %54 = arith.mulf %51, %53 : vector<4x256xf32>
    %c6 = arith.constant 6 : index
    %c0_23 = arith.constant 0 : index
    %c0_24 = arith.constant 0 : index
    %55 = vector.load %arg3[%c6, %c0_23, %c0_24] : memref<9x4x4xf32, #tpu.memory_space<vmem>>, vector<1x4x4xf32>
    %56 = vector.shape_cast %55 : vector<1x4x4xf32> to vector<4x4xf32>
    %cst_25 = arith.constant dense<0.000000e+00> : vector<4x256xf32>
    %57 = tpu.matmul %56, %54, %cst_25 {dimension_numbers = #tpu.dot_dimension_numbers<[1], [0], [0], [1], [0, 0, 1, 1], [], []>} : vector<4x4xf32>, vector<4x256xf32>, vector<4x256xf32> -> vector<4x256xf32>
    %58 = arith.addf %50, %57 : vector<4x256xf32>
    %c240_i32 = arith.constant 240 : i32
    %59 = tpu.dynamic_rotate %1 by %c240_i32 dim 1 : vector<4x256xf32>, i32 -> vector<4x256xf32>
    %60 = vector.extract_strided_slice %2 {offsets = [7, 0], sizes = [1, 256], strides = [1, 1]} : vector<9x256xf32> to vector<1x256xf32>
    %61 = vector.broadcast %60 : vector<1x256xf32> to vector<4x256xf32>
    %62 = arith.mulf %59, %61 : vector<4x256xf32>
    %c7 = arith.constant 7 : index
    %c0_26 = arith.constant 0 : index
    %c0_27 = arith.constant 0 : index
    %63 = vector.load %arg3[%c7, %c0_26, %c0_27] : memref<9x4x4xf32, #tpu.memory_space<vmem>>, vector<1x4x4xf32>
    %64 = vector.shape_cast %63 : vector<1x4x4xf32> to vector<4x4xf32>
    %cst_28 = arith.constant dense<0.000000e+00> : vector<4x256xf32>
    %65 = tpu.matmul %64, %62, %cst_28 {dimension_numbers = #tpu.dot_dimension_numbers<[1], [0], [0], [1], [0, 0, 1, 1], [], []>} : vector<4x4xf32>, vector<4x256xf32>, vector<4x256xf32> -> vector<4x256xf32>
    %66 = arith.addf %58, %65 : vector<4x256xf32>
    %c239_i32 = arith.constant 239 : i32
    %67 = tpu.dynamic_rotate %1 by %c239_i32 dim 1 : vector<4x256xf32>, i32 -> vector<4x256xf32>
    %68 = vector.extract_strided_slice %2 {offsets = [8, 0], sizes = [1, 256], strides = [1, 1]} : vector<9x256xf32> to vector<1x256xf32>
    %69 = vector.broadcast %68 : vector<1x256xf32> to vector<4x256xf32>
    %70 = arith.mulf %67, %69 : vector<4x256xf32>
    %c8 = arith.constant 8 : index
    %c0_29 = arith.constant 0 : index
    %c0_30 = arith.constant 0 : index
    %71 = vector.load %arg3[%c8, %c0_29, %c0_30] : memref<9x4x4xf32, #tpu.memory_space<vmem>>, vector<1x4x4xf32>
    %72 = vector.shape_cast %71 : vector<1x4x4xf32> to vector<4x4xf32>
    %cst_31 = arith.constant dense<0.000000e+00> : vector<4x256xf32>
    %73 = tpu.matmul %72, %70, %cst_31 {dimension_numbers = #tpu.dot_dimension_numbers<[1], [0], [0], [1], [0, 0, 1, 1], [], []>} : vector<4x4xf32>, vector<4x256xf32>, vector<4x256xf32> -> vector<4x256xf32>
    %74 = arith.addf %66, %73 : vector<4x256xf32>
    %c0_32 = arith.constant 0 : index
    %c0_33 = arith.constant 0 : index
    %75 = vector.load %arg4[%c0_32, %c0_33] : memref<4x1xf32, #tpu.memory_space<vmem>>, vector<4x1xf32>
    %76 = vector.broadcast %75 : vector<4x1xf32> to vector<4x256xf32>
    %77 = arith.addf %74, %76 : vector<4x256xf32>
    %cst_34 = arith.constant 0.000000e+00 : f32
    %78 = vector.broadcast %cst_34 : f32 to vector<4x256xf32>
    %79 = arith.maximumf %77, %78 : vector<4x256xf32>
    %cst_35 = arith.constant 0.000000e+00 : f32
    %80 = vector.broadcast %cst_35 : f32 to vector<4x256xf32>
    %c17_i32_36 = arith.constant 17 : i32
    %81 = tpu.dynamic_rotate %79 by %c17_i32_36 dim 1 : vector<4x256xf32>, i32 -> vector<4x256xf32>
    %82 = vector.extract_strided_slice %2 {offsets = [0, 0], sizes = [1, 256], strides = [1, 1]} : vector<9x256xf32> to vector<1x256xf32>
    %83 = vector.broadcast %82 : vector<1x256xf32> to vector<4x256xf32>
    %84 = arith.mulf %81, %83 : vector<4x256xf32>
    %c0_37 = arith.constant 0 : index
    %c0_38 = arith.constant 0 : index
    %c0_39 = arith.constant 0 : index
    %85 = vector.load %arg5[%c0_37, %c0_38, %c0_39] : memref<9x4x4xf32, #tpu.memory_space<vmem>>, vector<1x4x4xf32>
    %86 = vector.shape_cast %85 : vector<1x4x4xf32> to vector<4x4xf32>
    %cst_40 = arith.constant dense<0.000000e+00> : vector<4x256xf32>
    %87 = tpu.matmul %86, %84, %cst_40 {dimension_numbers = #tpu.dot_dimension_numbers<[1], [0], [0], [1], [0, 0, 1, 1], [], []>} : vector<4x4xf32>, vector<4x256xf32>, vector<4x256xf32> -> vector<4x256xf32>
    %88 = arith.addf %80, %87 : vector<4x256xf32>
    %c16_i32_41 = arith.constant 16 : i32
    %89 = tpu.dynamic_rotate %79 by %c16_i32_41 dim 1 : vector<4x256xf32>, i32 -> vector<4x256xf32>
    %90 = vector.extract_strided_slice %2 {offsets = [1, 0], sizes = [1, 256], strides = [1, 1]} : vector<9x256xf32> to vector<1x256xf32>
    %91 = vector.broadcast %90 : vector<1x256xf32> to vector<4x256xf32>
    %92 = arith.mulf %89, %91 : vector<4x256xf32>
    %c1_42 = arith.constant 1 : index
    %c0_43 = arith.constant 0 : index
    %c0_44 = arith.constant 0 : index
    %93 = vector.load %arg5[%c1_42, %c0_43, %c0_44] : memref<9x4x4xf32, #tpu.memory_space<vmem>>, vector<1x4x4xf32>
    %94 = vector.shape_cast %93 : vector<1x4x4xf32> to vector<4x4xf32>
    %cst_45 = arith.constant dense<0.000000e+00> : vector<4x256xf32>
    %95 = tpu.matmul %94, %92, %cst_45 {dimension_numbers = #tpu.dot_dimension_numbers<[1], [0], [0], [1], [0, 0, 1, 1], [], []>} : vector<4x4xf32>, vector<4x256xf32>, vector<4x256xf32> -> vector<4x256xf32>
    %96 = arith.addf %88, %95 : vector<4x256xf32>
    %c15_i32_46 = arith.constant 15 : i32
    %97 = tpu.dynamic_rotate %79 by %c15_i32_46 dim 1 : vector<4x256xf32>, i32 -> vector<4x256xf32>
    %98 = vector.extract_strided_slice %2 {offsets = [2, 0], sizes = [1, 256], strides = [1, 1]} : vector<9x256xf32> to vector<1x256xf32>
    %99 = vector.broadcast %98 : vector<1x256xf32> to vector<4x256xf32>
    %100 = arith.mulf %97, %99 : vector<4x256xf32>
    %c2_47 = arith.constant 2 : index
    %c0_48 = arith.constant 0 : index
    %c0_49 = arith.constant 0 : index
    %101 = vector.load %arg5[%c2_47, %c0_48, %c0_49] : memref<9x4x4xf32, #tpu.memory_space<vmem>>, vector<1x4x4xf32>
    %102 = vector.shape_cast %101 : vector<1x4x4xf32> to vector<4x4xf32>
    %cst_50 = arith.constant dense<0.000000e+00> : vector<4x256xf32>
    %103 = tpu.matmul %102, %100, %cst_50 {dimension_numbers = #tpu.dot_dimension_numbers<[1], [0], [0], [1], [0, 0, 1, 1], [], []>} : vector<4x4xf32>, vector<4x256xf32>, vector<4x256xf32> -> vector<4x256xf32>
    %104 = arith.addf %96, %103 : vector<4x256xf32>
    %c1_i32_51 = arith.constant 1 : i32
    %105 = tpu.dynamic_rotate %79 by %c1_i32_51 dim 1 : vector<4x256xf32>, i32 -> vector<4x256xf32>
    %106 = vector.extract_strided_slice %2 {offsets = [3, 0], sizes = [1, 256], strides = [1, 1]} : vector<9x256xf32> to vector<1x256xf32>
    %107 = vector.broadcast %106 : vector<1x256xf32> to vector<4x256xf32>
    %108 = arith.mulf %105, %107 : vector<4x256xf32>
    %c3_52 = arith.constant 3 : index
    %c0_53 = arith.constant 0 : index
    %c0_54 = arith.constant 0 : index
    %109 = vector.load %arg5[%c3_52, %c0_53, %c0_54] : memref<9x4x4xf32, #tpu.memory_space<vmem>>, vector<1x4x4xf32>
    %110 = vector.shape_cast %109 : vector<1x4x4xf32> to vector<4x4xf32>
    %cst_55 = arith.constant dense<0.000000e+00> : vector<4x256xf32>
    %111 = tpu.matmul %110, %108, %cst_55 {dimension_numbers = #tpu.dot_dimension_numbers<[1], [0], [0], [1], [0, 0, 1, 1], [], []>} : vector<4x4xf32>, vector<4x256xf32>, vector<4x256xf32> -> vector<4x256xf32>
    %112 = arith.addf %104, %111 : vector<4x256xf32>
    %113 = vector.extract_strided_slice %2 {offsets = [4, 0], sizes = [1, 256], strides = [1, 1]} : vector<9x256xf32> to vector<1x256xf32>
    %114 = vector.broadcast %113 : vector<1x256xf32> to vector<4x256xf32>
    %115 = arith.mulf %79, %114 : vector<4x256xf32>
    %c4_56 = arith.constant 4 : index
    %c0_57 = arith.constant 0 : index
    %c0_58 = arith.constant 0 : index
    %116 = vector.load %arg5[%c4_56, %c0_57, %c0_58] : memref<9x4x4xf32, #tpu.memory_space<vmem>>, vector<1x4x4xf32>
    %117 = vector.shape_cast %116 : vector<1x4x4xf32> to vector<4x4xf32>
    %cst_59 = arith.constant dense<0.000000e+00> : vector<4x256xf32>
    %118 = tpu.matmul %117, %115, %cst_59 {dimension_numbers = #tpu.dot_dimension_numbers<[1], [0], [0], [1], [0, 0, 1, 1], [], []>} : vector<4x4xf32>, vector<4x256xf32>, vector<4x256xf32> -> vector<4x256xf32>
    %119 = arith.addf %112, %118 : vector<4x256xf32>
    %c255_i32_60 = arith.constant 255 : i32
    %120 = tpu.dynamic_rotate %79 by %c255_i32_60 dim 1 : vector<4x256xf32>, i32 -> vector<4x256xf32>
    %121 = vector.extract_strided_slice %2 {offsets = [5, 0], sizes = [1, 256], strides = [1, 1]} : vector<9x256xf32> to vector<1x256xf32>
    %122 = vector.broadcast %121 : vector<1x256xf32> to vector<4x256xf32>
    %123 = arith.mulf %120, %122 : vector<4x256xf32>
    %c5_61 = arith.constant 5 : index
    %c0_62 = arith.constant 0 : index
    %c0_63 = arith.constant 0 : index
    %124 = vector.load %arg5[%c5_61, %c0_62, %c0_63] : memref<9x4x4xf32, #tpu.memory_space<vmem>>, vector<1x4x4xf32>
    %125 = vector.shape_cast %124 : vector<1x4x4xf32> to vector<4x4xf32>
    %cst_64 = arith.constant dense<0.000000e+00> : vector<4x256xf32>
    %126 = tpu.matmul %125, %123, %cst_64 {dimension_numbers = #tpu.dot_dimension_numbers<[1], [0], [0], [1], [0, 0, 1, 1], [], []>} : vector<4x4xf32>, vector<4x256xf32>, vector<4x256xf32> -> vector<4x256xf32>
    %127 = arith.addf %119, %126 : vector<4x256xf32>
    %c241_i32_65 = arith.constant 241 : i32
    %128 = tpu.dynamic_rotate %79 by %c241_i32_65 dim 1 : vector<4x256xf32>, i32 -> vector<4x256xf32>
    %129 = vector.extract_strided_slice %2 {offsets = [6, 0], sizes = [1, 256], strides = [1, 1]} : vector<9x256xf32> to vector<1x256xf32>
    %130 = vector.broadcast %129 : vector<1x256xf32> to vector<4x256xf32>
    %131 = arith.mulf %128, %130 : vector<4x256xf32>
    %c6_66 = arith.constant 6 : index
    %c0_67 = arith.constant 0 : index
    %c0_68 = arith.constant 0 : index
    %132 = vector.load %arg5[%c6_66, %c0_67, %c0_68] : memref<9x4x4xf32, #tpu.memory_space<vmem>>, vector<1x4x4xf32>
    %133 = vector.shape_cast %132 : vector<1x4x4xf32> to vector<4x4xf32>
    %cst_69 = arith.constant dense<0.000000e+00> : vector<4x256xf32>
    %134 = tpu.matmul %133, %131, %cst_69 {dimension_numbers = #tpu.dot_dimension_numbers<[1], [0], [0], [1], [0, 0, 1, 1], [], []>} : vector<4x4xf32>, vector<4x256xf32>, vector<4x256xf32> -> vector<4x256xf32>
    %135 = arith.addf %127, %134 : vector<4x256xf32>
    %c240_i32_70 = arith.constant 240 : i32
    %136 = tpu.dynamic_rotate %79 by %c240_i32_70 dim 1 : vector<4x256xf32>, i32 -> vector<4x256xf32>
    %137 = vector.extract_strided_slice %2 {offsets = [7, 0], sizes = [1, 256], strides = [1, 1]} : vector<9x256xf32> to vector<1x256xf32>
    %138 = vector.broadcast %137 : vector<1x256xf32> to vector<4x256xf32>
    %139 = arith.mulf %136, %138 : vector<4x256xf32>
    %c7_71 = arith.constant 7 : index
    %c0_72 = arith.constant 0 : index
    %c0_73 = arith.constant 0 : index
    %140 = vector.load %arg5[%c7_71, %c0_72, %c0_73] : memref<9x4x4xf32, #tpu.memory_space<vmem>>, vector<1x4x4xf32>
    %141 = vector.shape_cast %140 : vector<1x4x4xf32> to vector<4x4xf32>
    %cst_74 = arith.constant dense<0.000000e+00> : vector<4x256xf32>
    %142 = tpu.matmul %141, %139, %cst_74 {dimension_numbers = #tpu.dot_dimension_numbers<[1], [0], [0], [1], [0, 0, 1, 1], [], []>} : vector<4x4xf32>, vector<4x256xf32>, vector<4x256xf32> -> vector<4x256xf32>
    %143 = arith.addf %135, %142 : vector<4x256xf32>
    %c239_i32_75 = arith.constant 239 : i32
    %144 = tpu.dynamic_rotate %79 by %c239_i32_75 dim 1 : vector<4x256xf32>, i32 -> vector<4x256xf32>
    %145 = vector.extract_strided_slice %2 {offsets = [8, 0], sizes = [1, 256], strides = [1, 1]} : vector<9x256xf32> to vector<1x256xf32>
    %146 = vector.broadcast %145 : vector<1x256xf32> to vector<4x256xf32>
    %147 = arith.mulf %144, %146 : vector<4x256xf32>
    %c8_76 = arith.constant 8 : index
    %c0_77 = arith.constant 0 : index
    %c0_78 = arith.constant 0 : index
    %148 = vector.load %arg5[%c8_76, %c0_77, %c0_78] : memref<9x4x4xf32, #tpu.memory_space<vmem>>, vector<1x4x4xf32>
    %149 = vector.shape_cast %148 : vector<1x4x4xf32> to vector<4x4xf32>
    %cst_79 = arith.constant dense<0.000000e+00> : vector<4x256xf32>
    %150 = tpu.matmul %149, %147, %cst_79 {dimension_numbers = #tpu.dot_dimension_numbers<[1], [0], [0], [1], [0, 0, 1, 1], [], []>} : vector<4x4xf32>, vector<4x256xf32>, vector<4x256xf32> -> vector<4x256xf32>
    %151 = arith.addf %143, %150 : vector<4x256xf32>
    %c0_80 = arith.constant 0 : index
    %c0_81 = arith.constant 0 : index
    %152 = vector.load %arg6[%c0_80, %c0_81] : memref<4x1xf32, #tpu.memory_space<vmem>>, vector<4x1xf32>
    %153 = vector.broadcast %152 : vector<4x1xf32> to vector<4x256xf32>
    %154 = arith.addf %151, %153 : vector<4x256xf32>
    %155 = arith.addf %1, %154 : vector<4x256xf32>
    %cst_82 = arith.constant 0.000000e+00 : f32
    %156 = vector.broadcast %cst_82 : f32 to vector<4x256xf32>
    %157 = arith.maximumf %155, %156 : vector<4x256xf32>
    %c0_83 = arith.constant 0 : index
    %c0_84 = arith.constant 0 : index
    %c0_85 = arith.constant 0 : index
    %158 = vector.load %arg7[%c0_83, %c0_84, %c0_85] : memref<1x4x256xf32, #tpu.memory_space<vmem>>, vector<1x4x256xf32>
    %159 = vector.shape_cast %158 : vector<1x4x256xf32> to vector<4x256xf32>
    %160 = vector.shape_cast %157 : vector<4x256xf32> to vector<1x4x256xf32>
    tpu.vector_store %arg7[%c0_83, %c0_84, %c0_85], %160 {strides = array<i32>} : memref<1x4x256xf32, #tpu.memory_space<vmem>>, vector<1x4x256xf32>,
    return
  }
  func.func @transform_0(%arg0: i32) -> (i32, i32, i32) {
    %c0_i32 = arith.constant 0 : i32
    %c0_i32_0 = arith.constant 0 : i32
    %c0_i32_1 = arith.constant 0 : i32
    return %arg0, %c0_i32, %c0_i32_0 : i32, i32, i32
  }
  func.func @transform_1(%arg0: i32) -> (i32, i32) {
    %c0_i32 = arith.constant 0 : i32
    %c0_i32_0 = arith.constant 0 : i32
    %c0_i32_1 = arith.constant 0 : i32
    return %c0_i32, %c0_i32_0 : i32, i32
  }
  func.func @transform_2(%arg0: i32) -> (i32, i32, i32) {
    %c0_i32 = arith.constant 0 : i32
    %c0_i32_0 = arith.constant 0 : i32
    %c0_i32_1 = arith.constant 0 : i32
    %c0_i32_2 = arith.constant 0 : i32
    return %c0_i32, %c0_i32_0, %c0_i32_1 : i32, i32, i32
  }
  func.func @transform_3(%arg0: i32) -> (i32, i32) {
    %c0_i32 = arith.constant 0 : i32
    %c0_i32_0 = arith.constant 0 : i32
    %c0_i32_1 = arith.constant 0 : i32
    return %c0_i32, %c0_i32_0 : i32, i32
  }
  func.func @transform_4(%arg0: i32) -> (i32, i32, i32) {
    %c0_i32 = arith.constant 0 : i32
    %c0_i32_0 = arith.constant 0 : i32
    %c0_i32_1 = arith.constant 0 : i32
    %c0_i32_2 = arith.constant 0 : i32
    return %c0_i32, %c0_i32_0, %c0_i32_1 : i32, i32, i32
  }
  func.func @transform_5(%arg0: i32) -> (i32, i32) {
    %c0_i32 = arith.constant 0 : i32
    %c0_i32_0 = arith.constant 0 : i32
    %c0_i32_1 = arith.constant 0 : i32
    return %c0_i32, %c0_i32_0 : i32, i32
  }
  func.func @transform_6(%arg0: i32) -> (i32, i32, i32) {
    %c0_i32 = arith.constant 0 : i32
    %c0_i32_0 = arith.constant 0 : i32
    %c0_i32_1 = arith.constant 0 : i32
    return %arg0, %c0_i32, %c0_i32_0 : i32, i32, i32
  }
}

</mosaic_0001>

<llo_original>
// kernel: residual_block.1
$region0: #{residual_block.1}
  #allocation0 [shape = 'u32[]', space=smem, size = 0x4, offset = 0x4, fixed_abs, tag = 'smem constant byte address 0x4 - core index']
  #allocation1 [shape = 'u32[72,128]{1,0:T(1,128)}', space=vmem, size = 0x9000, scoped, tag = 'internal scratch']
  %s0 = inlined_call_operand.vmem [shape: f32[2,4,256], index: 0, kind: input, shape index: {}]
  %s1 = inlined_call_operand.vmem [shape: f32[9,256], index: 1, kind: input, shape index: {}]
  %s2 = inlined_call_operand.vmem [shape: f32[9,4,4], index: 2, kind: input, shape index: {}]
  %s3 = inlined_call_operand.vmem [shape: f32[4,1], index: 3, kind: input, shape index: {}]
  %s4 = inlined_call_operand.vmem [shape: f32[9,4,4], index: 4, kind: input, shape index: {}]
  %s5 = inlined_call_operand.vmem [shape: f32[4,1], index: 5, kind: input, shape index: {}]
  %s6 = inlined_call_operand.vmem [shape: f32[2,4,256], index: 6, kind: output, shape index: {}]
  %s7 = sld [smem:[#allocation0]]
  $region57: #{residual_block.1} parent=0
    _
  %s9 = ssub.s32 1, %s7
  %s10 = scalar_select 0, %s9, %s7
  loop: start=0, step=1, limit=4
  $region2: #{residual_block.1} parent=0 // loop_pre_header
    _
  $region3: #{residual_block.1} parent=0 // loop_header
    %s12 = sphi 0, %s16
    %p13 = scmp.ge.s32.totalorder %s12, 4
    %s22 = sphi 0, %s24
    %s25 = sphi 0, %s22
    %s26 = sphi 0, %s25
    %s42 = sphi 0, %s26
    %s46 = sphi 0, %s46
    %s48 = sphi 0, %s46
    %s49 = sphi 0, %s48
    %s63 = sphi 0, %s49
    %s67 = sphi 0, %s67
    %s69 = sphi 0, %s67
    %s70 = sphi 0, %s69
    %s84 = sphi 0, %s70
    %s88 = sphi 0, %s88
    %s90 = sphi 0, %s88
    %s91 = sphi 0, %s90
    %s105 = sphi 0, %s91
    %s109 = sphi 0, %s109
    %s111 = sphi 0, %s109
    %s112 = sphi 0, %s111
    %s126 = sphi 0, %s112
    %s130 = sphi 0, %s130
    %s132 = sphi 0, %s130
    %s133 = sphi 0, %s132
    %s147 = sphi 0, %s133
    %s153 = sphi 0, %s155
    %s156 = sphi 0, %s153
    %s157 = sphi 0, %s156
    %s173 = sphi 0, %s157
  $region4: #{residual_block.1} parent=0 // loop_header_branch
    %15 = sbr.rel (%p13) target = $region8
  $region5: #{residual_block.1} parent=0 // loop_body
    %s17 = ssub.s32 %s12, 1
    %s18 = ssub.s32 %s12, 2
    %s19 = sadd.s32 %s12, 1
    %s20 = ssub.s32 %s12, %s19
    %p21 = scmp.eq.s32.totalorder %s20, 0
    %s23 = sadd.s32 %s22, 1
    %s24 = scalar_select %p21, %s22, %s23
    %p27 = pneg %p21
    %p28 = scmp.eq.s32.totalorder %s12, 1
    %p29 = por %p27, %p28
    %p30 = scmp.ne.s32.totalorder %s22, %s25
    %p31 = scmp.eq.s32.totalorder %s12, 0
    %p32 = por %p30, %p31
    %p33 = scmp.ne.s32.totalorder %s22, %s25
    %p34 = scmp.eq.s32.totalorder %s17, 1
    %p35 = por %p33, %p34
    %p36 = scmp.ne.s32.totalorder %s25, %s26
    %p37 = scmp.eq.s32.totalorder %s17, 0
    %p38 = por %p36, %p37
    %p39 = scmp.ne.s32.totalorder %s25, %s26
    %p40 = scmp.eq.s32.totalorder %s18, 1
    %p41 = por %p39, %p40
    %p43 = scmp.ne.s32.totalorder %s26, %s42
    %p44 = scmp.eq.s32.totalorder %s18, 0
    %p45 = por %p43, %p44
    %s47 = sadd.s32 %s46, 1
    %p50 = scmp.eq.s32.totalorder %s12, 1
    %p51 = scmp.ne.s32.totalorder %s46, %s48
    %p52 = scmp.eq.s32.totalorder %s12, 0
    %p53 = por %p51, %p52
    %p54 = scmp.ne.s32.totalorder %s46, %s48
    %p55 = scmp.eq.s32.totalorder %s17, 1
    %p56 = por %p54, %p55
    %p57 = scmp.ne.s32.totalorder %s48, %s49
    %p58 = scmp.eq.s32.totalorder %s17, 0
    %p59 = por %p57, %p58
    %p60 = scmp.ne.s32.totalorder %s48, %s49
    %p61 = scmp.eq.s32.totalorder %s18, 1
    %p62 = por %p60, %p61
    %p64 = scmp.ne.s32.totalorder %s49, %s63
    %p65 = scmp.eq.s32.totalorder %s18, 0
    %p66 = por %p64, %p65
    %s68 = sadd.s32 %s67, 1
    %p71 = scmp.eq.s32.totalorder %s12, 1
    %p72 = scmp.ne.s32.totalorder %s67, %s69
    %p73 = scmp.eq.s32.totalorder %s12, 0
    %p74 = por %p72, %p73
    %p75 = scmp.ne.s32.totalorder %s67, %s69
    %p76 = scmp.eq.s32.totalorder %s17, 1
    %p77 = por %p75, %p76
    %p78 = scmp.ne.s32.totalorder %s69, %s70
    %p79 = scmp.eq.s32.totalorder %s17, 0
    %p80 = por %p78, %p79
    %p81 = scmp.ne.s32.totalorder %s69, %s70
    %p82 = scmp.eq.s32.totalorder %s18, 1
    %p83 = por %p81, %p82
    %p85 = scmp.ne.s32.totalorder %s70, %s84
    %p86 = scmp.eq.s32.totalorder %s18, 0
    %p87 = por %p85, %p86
    %s89 = sadd.s32 %s88, 1
    %p92 = scmp.eq.s32.totalorder %s12, 1
    %p93 = scmp.ne.s32.totalorder %s88, %s90
    %p94 = scmp.eq.s32.totalorder %s12, 0
    %p95 = por %p93, %p94
    %p96 = scmp.ne.s32.totalorder %s88, %s90
    %p97 = scmp.eq.s32.totalorder %s17, 1
    %p98 = por %p96, %p97
    %p99 = scmp.ne.s32.totalorder %s90, %s91
    %p100 = scmp.eq.s32.totalorder %s17, 0
    %p101 = por %p99, %p100
    %p102 = scmp.ne.s32.totalorder %s90, %s91
    %p103 = scmp.eq.s32.totalorder %s18, 1
    %p104 = por %p102, %p103
    %p106 = scmp.ne.s32.totalorder %s91, %s105
    %p107 = scmp.eq.s32.totalorder %s18, 0
    %p108 = por %p106, %p107
    %s110 = sadd.s32 %s109, 1
    %p113 = scmp.eq.s32.totalorder %s12, 1
    %p114 = scmp.ne.s32.totalorder %s109, %s111
    %p115 = scmp.eq.s32.totalorder %s12, 0
    %p116 = por %p114, %p115
    %p117 = scmp.ne.s32.totalorder %s109, %s111
    %p118 = scmp.eq.s32.totalorder %s17, 1
    %p119 = por %p117, %p118
    %p120 = scmp.ne.s32.totalorder %s111, %s112
    %p121 = scmp.eq.s32.totalorder %s17, 0
    %p122 = por %p120, %p121
    %p123 = scmp.ne.s32.totalorder %s111, %s112
    %p124 = scmp.eq.s32.totalorder %s18, 1
    %p125 = por %p123, %p124
    %p127 = scmp.ne.s32.totalorder %s112, %s126
    %p128 = scmp.eq.s32.totalorder %s18, 0
    %p129 = por %p127, %p128
    %s131 = sadd.s32 %s130, 1
    %p134 = scmp.eq.s32.totalorder %s12, 1
    %p135 = scmp.ne.s32.totalorder %s130, %s132
    %p136 = scmp.eq.s32.totalorder %s12, 0
    %p137 = por %p135, %p136
    %p138 = scmp.ne.s32.totalorder %s130, %s132
    %p139 = scmp.eq.s32.totalorder %s17, 1
    %p140 = por %p138, %p139
    %p141 = scmp.ne.s32.totalorder %s132, %s133
    %p142 = scmp.eq.s32.totalorder %s17, 0
    %p143 = por %p141, %p142
    %p144 = scmp.ne.s32.totalorder %s132, %s133
    %p145 = scmp.eq.s32.totalorder %s18, 1
    %p146 = por %p144, %p145
    %p148 = scmp.ne.s32.totalorder %s133, %s147
    %p149 = scmp.eq.s32.totalorder %s18, 0
    %p150 = por %p148, %p149
    %s151 = ssub.s32 %s12, %s19
    %p152 = scmp.eq.s32.totalorder %s151, 0
    %s154 = sadd.s32 %s153, 1
    %s155 = scalar_select %p152, %s153, %s154
    %p158 = pneg %p152
    %p159 = scmp.eq.s32.totalorder %s12, 1
    %p160 = por %p158, %p159
    %p161 = scmp.ne.s32.totalorder %s153, %s156
    %p162 = scmp.eq.s32.totalorder %s12, 0
    %p163 = por %p161, %p162
    %p164 = scmp.ne.s32.totalorder %s153, %s156
    %p165 = scmp.eq.s32.totalorder %s17, 1
    %p166 = por %p164, %p165
    %p167 = scmp.ne.s32.totalorder %s156, %s157
    %p168 = scmp.eq.s32.totalorder %s17, 0
    %p169 = por %p167, %p168
    %p170 = scmp.ne.s32.totalorder %s156, %s157
    %p171 = scmp.eq.s32.totalorder %s18, 1
    %p172 = por %p170, %p171
    %p174 = scmp.ne.s32.totalorder %s157, %s173
    %p175 = scmp.eq.s32.totalorder %s18, 0
    %p176 = por %p174, %p175
    %p177 = scmp.le.s32.totalorder 1, %s12
    %p178 = scmp.lt.s32.totalorder %s12, 3
    %p179 = pnand %p177, %p178
    %p180 = pneg %p179
    // Predicated region
    $region9: #{residual_block.1} parent=5 // pred_check
      _
    $region10: #{residual_block.1} parent=5 // pred_check_branch
      %182 = sbr.rel (%p179) target = $region12
    $region11: #{residual_block.1} parent=5 // pred_region
      %s183 = ssub.s32 %s12, 1
      // Predicated region
      $region13: #{residual_block.1} parent=11 // pred_check
        %p184 = pneg %p59
      $region14: #{residual_block.1} parent=11 // pred_check_branch
        %186 = sbr.rel (%p184) target = $region16
      $region15: #{residual_block.1} parent=11 // pred_region
        _
      $region16: #{residual_block.1} parent=11 // pred_fallthru
        _
      // Predicated region
      $region17: #{residual_block.1} parent=11 // pred_check
        %p187 = pneg %p80
      $region18: #{residual_block.1} parent=11 // pred_check_branch
        %189 = sbr.rel (%p187) target = $region20
      $region19: #{residual_block.1} parent=11 // pred_region
        _
      $region20: #{residual_block.1} parent=11 // pred_fallthru
        _
      // Predicated region
      $region21: #{residual_block.1} parent=11 // pred_check
        %p190 = pneg %p101
      $region22: #{residual_block.1} parent=11 // pred_check_branch
        %192 = sbr.rel (%p190) target = $region24
      $region23: #{residual_block.1} parent=11 // pred_region
        _
      $region24: #{residual_block.1} parent=11 // pred_fallthru
        _
      // Predicated region
      $region25: #{residual_block.1} parent=11 // pred_check
        %p193 = pneg %p122
      $region26: #{residual_block.1} parent=11 // pred_check_branch
        %195 = sbr.rel (%p193) target = $region28
      $region27: #{residual_block.1} parent=11 // pred_region
        _
      $region28: #{residual_block.1} parent=11 // pred_fallthru
        _
      // Predicated region
      $region29: #{residual_block.1} parent=11 // pred_check
        %p196 = pneg %p143
      $region30: #{residual_block.1} parent=11 // pred_check_branch
        %198 = sbr.rel (%p196) target = $region32
      $region31: #{residual_block.1} parent=11 // pred_region
        _
      $region32: #{residual_block.1} parent=11 // pred_fallthru
        _
    $region12: #{residual_block.1} parent=5 // pred_fallthru
      _
    %p199 = scmp.lt.s32.totalorder %s12, 2
    // Predicated region
    $region33: #{residual_block.1} parent=5 // pred_check
      %p200 = pneg %p199
    $region34: #{residual_block.1} parent=5 // pred_check_branch
      %202 = sbr.rel (%p200) target = $region36
    $region35: #{residual_block.1} parent=5 // pred_region
      // Predicated region
      $region37: #{residual_block.1} parent=35 // pred_check
        %p203 = pneg %p32
      $region38: #{residual_block.1} parent=35 // pred_check_branch
        %205 = sbr.rel (%p203) target = $region40
      $region39: #{residual_block.1} parent=35 // pred_region
        %p206 = scmp.lt.s32.totalorder %s12, 1
        %s207 = scalar_select %p206, %s12, 1
        %s208 = smul.addr %s207, 2
        %s209 = smul.addr %s208, 4
        %s210 = scalar_lea.vmem %s0, %s209
      $region40: #{residual_block.1} parent=35 // pred_fallthru
        _
    $region36: #{residual_block.1} parent=5 // pred_fallthru
      _
    %p211 = scmp.le.s32.totalorder 1, %s12
    %p212 = scmp.lt.s32.totalorder %s12, 3
    %p213 = pnand %p211, %p212
    %p214 = pneg %p213
    // Predicated region
    $region41: #{residual_block.1} parent=5 // pred_check
      _
    $region42: #{residual_block.1} parent=5 // pred_check_branch
      %216 = sbr.rel (%p213) target = $region44
    $region43: #{residual_block.1} parent=5 // pred_region
      %s217 = ssub.s32 %s12, 1
      %p218 = scmp.lt.s32.totalorder %s17, 1
      %s219 = scalar_select %p218, %s17, 1
      %s220 = smul.addr %s219, 2
      %s221 = smul.addr %s220, 4
      %s222 = scalar_lea.vmem %s0, %s221
      %p223 = pneg %p38
      %p224 = pneg %p35
      %p225 = pneg %p59
      %p226 = pneg %p56
      %p227 = pneg %p80
      %p228 = pneg %p77
      %p229 = pneg %p101
      %p230 = pneg %p98
      %p231 = pneg %p122
      %p232 = pneg %p119
      %p233 = pneg %p143
      %p234 = pneg %p140
      %p235 = pneg %p169
      %p236 = pneg %p166
      %p237 = scmp.lt.s32.totalorder %s17, 1
      %s238 = scalar_select %p237, %s17, 1
      %s239 = smul.addr %s238, 2
      %s240 = smul.addr %s239, 4
      %s241 = scalar_lea.vmem %s6, %s240
      %p242 = scmp.lt.s32.totalorder %s17, 1
      %s243 = scalar_select %p242, %s17, 1
      %s244 = smul.addr %s243, 2
      %s245 = smul.addr %s244, 4
      %s246 = scalar_lea.vmem %s0, %s245
      %p247 = scmp.lt.s32.totalorder %s17, 1
      %s248 = scalar_select %p247, %s17, 1
      %s249 = smul.addr %s248, 2
      %s250 = smul.addr %s249, 4
      %s251 = scalar_lea.vmem %s6, %s250
      %v252 = vld [vmem:[%s246] sm:$0xff]
      %v253 = vld [vmem:[%s1] sm:$0xff]
      %v254 = vld [vmem:[%s1 + $0x8] sm:$0xff]
      %v255 = vld [vmem:[%s1 + $0x10] sm:$0x1]
      %v256 = vld [vmem:[%s1 + $0x18] sm:$0x1]
      %258 = vst [vmem:[#allocation1] ss:$2 sm:$0xff] %v252
      %v259 = vld.sshfl [vmem:[#allocation1] sm:$0xff pattern:$0x75316420]
      %v260 = vld.sshfl [vmem:[#allocation1 + $0x8] sm:$0xff pattern:$0x75316420]
      %263 = vrot.lane.b32.xlu0 %v259, 17
      %v264 = vpop.permute.xlu0 %263
      %265 = vrot.lane.b32.xlu0 %v260, 17
      %v266 = vpop.permute.xlu0 %265
      %v267 = vlaneseq
      %v268 = vand.u32 %v267, 127
      %vm269 = vcmp.lt.s32.totalorder %v268, 17
      %v270 = vsel %vm269, %v264, %v266
      %v271 = vsel %vm269, %v266, %v264
      %v272 = vperm.slane %v253, 0
      %v273 = vperm.slane %v254, 0
      %v274 = vmul.f32 %v271, %v272
      %v275 = vmul.f32 %v270, %v273
      %v276 = vld [vmem:[%s2] sm:$0xf]
      %277 = vst [vmem:[#allocation1] ss:$2 sm:$0xff] %v252
      %v278 = vld.sshfl [vmem:[#allocation1] sm:$0xff pattern:$0x75316420]
      %v279 = vld.sshfl [vmem:[#allocation1 + $0x8] sm:$0xff pattern:$0x75316420]
      %282 = vrot.lane.b32.xlu0 %v278, 16
      %v283 = vpop.permute.xlu0 %282
      %284 = vrot.lane.b32.xlu0 %v279, 16
      %v285 = vpop.permute.xlu0 %284
      %vm286 = vcmp.lt.s32.totalorder %v268, 16
      %v287 = vsel %vm286, %v283, %v285
      %v288 = vsel %vm286, %v285, %v283
      %v289 = vperm.slane %v253, 1
      %v290 = vperm.slane %v254, 1
      %v291 = vmul.f32 %v288, %v289
      %v292 = vmul.f32 %v287, %v290
      %s293 = scalar_lea.vmem %s2, 4
      %v294 = vld [vmem:[%s293] sm:$0xf]
      %vm295 = vcmask 31744
      %v297 = vsel %vm295, %v294, 0
      %vm299 = vcmask 1043456
      %v301 = vsel %vm299, %v291, 0
      %v304 = vsel %vm299, %v292, 0
      %306 = vmatpush.msra.mxu0 0.0
      %307 = vmatpush.msra.mxu0 0.0
      %308 = vmatpush.msra.mxu0 0.0
      %309 = vmatpush.msra.mxu0 0.0
      %310 = vmatpush.msra.mxu0 0.0
      %311 = vmatpush.msra.mxu0 0.0
      %312 = vmatpush.msra.mxu0 0.0
      %313 = vmatpush.msra.mxu0 0.0
      %314 = vmatpush.msra.mxu0 0.0
      %315 = vmatpush.msra.mxu0 0.0
      %316 = vmatpush.msra.mxu0 0.0
      %317 = vmatpush.msra.mxu0 0.0
      %318 = vmatpush.msra.mxu0 0.0
      %319 = vmatpush.msra.mxu0 0.0
      %320 = vmatpush.msra.mxu0 0.0
      %321 = vmatpush.msra.mxu0 %v301
      %322 = vmatmul.f32.gmra.mxu0 %v297
      %v323 = vpop.f32.mrf.mxu0
      %v324 = vadd.f32 0.0, %v323
      %325 = vdwg.mxu0
      %326 = vmatpush.msra.mxu0 0.0
      %327 = vmatpush.msra.mxu0 0.0
      %328 = vmatpush.msra.mxu0 0.0
      %329 = vmatpush.msra.mxu0 0.0
      %330 = vmatpush.msra.mxu0 0.0
      %331 = vmatpush.msra.mxu0 0.0
      %332 = vmatpush.msra.mxu0 0.0
      %333 = vmatpush.msra.mxu0 0.0
      %334 = vmatpush.msra.mxu0 0.0
      %335 = vmatpush.msra.mxu0 0.0
      %336 = vmatpush.msra.mxu0 0.0
      %337 = vmatpush.msra.mxu0 0.0
      %338 = vmatpush.msra.mxu0 0.0
      %339 = vmatpush.msra.mxu0 0.0
      %340 = vmatpush.msra.mxu0 0.0
      %341 = vmatpush.msra.mxu0 %v304
      %342 = vmatmul.f32.gmra.mxu0 %v297
      %v343 = vpop.f32.mrf.mxu0
      %v344 = vadd.f32 0.0, %v343
      %345 = vdwg.mxu0
      %v347 = vsel %vm295, %v276, 0
      %v350 = vsel %vm299, %v274, 0
      %v353 = vsel %vm299, %v275, 0
      %355 = vmatpush.msra.mxu0 0.0
      %356 = vmatpush.msra.mxu0 0.0
      %357 = vmatpush.msra.mxu0 0.0
      %358 = vmatpush.msra.mxu0 0.0
      %359 = vmatpush.msra.mxu0 0.0
      %360 = vmatpush.msra.mxu0 0.0
      %361 = vmatpush.msra.mxu0 0.0
      %362 = vmatpush.msra.mxu0 0.0
      %363 = vmatpush.msra.mxu0 0.0
      %364 = vmatpush.msra.mxu0 0.0
      %365 = vmatpush.msra.mxu0 0.0
      %366 = vmatpush.msra.mxu0 0.0
      %367 = vmatpush.msra.mxu0 0.0
      %368 = vmatpush.msra.mxu0 0.0
      %369 = vmatpush.msra.mxu0 0.0
      %370 = vmatpush.msra.mxu0 %v350
      %371 = vmatmul.f32.gmra.mxu0 %v347
      %v372 = vpop.f32.mrf.mxu0
      %v373 = vadd.f32 %v324, %v372
      %374 = vdwg.mxu0
      %375 = vmatpush.msra.mxu0 0.0
      %376 = vmatpush.msra.mxu0 0.0
      %377 = vmatpush.msra.mxu0 0.0
      %378 = vmatpush.msra.mxu0 0.0
      %379 = vmatpush.msra.mxu0 0.0
      %380 = vmatpush.msra.mxu0 0.0
      %381 = vmatpush.msra.mxu0 0.0
      %382 = vmatpush.msra.mxu0 0.0
      %383 = vmatpush.msra.mxu0 0.0
      %384 = vmatpush.msra.mxu0 0.0
      %385 = vmatpush.msra.mxu0 0.0
      %386 = vmatpush.msra.mxu0 0.0
      %387 = vmatpush.msra.mxu0 0.0
      %388 = vmatpush.msra.mxu0 0.0
      %389 = vmatpush.msra.mxu0 0.0
      %390 = vmatpush.msra.mxu0 %v353
      %391 = vmatmul.f32.gmra.mxu0 %v347
      %v392 = vpop.f32.mrf.mxu0
      %v393 = vadd.f32 %v344, %v392
      %394 = vdwg.mxu0
      %395 = vst [vmem:[#allocation1] ss:$2 sm:$0xff] %v252
      %v396 = vld.sshfl [vmem:[#allocation1] sm:$0xff pattern:$0x75316420]
      %v397 = vld.sshfl [vmem:[#allocation1 + $0x8] sm:$0xff pattern:$0x75316420]
      %400 = vrot.lane.b32.xlu0 %v396, 15
      %v401 = vpop.permute.xlu0 %400
      %402 = vrot.lane.b32.xlu0 %v397, 15
      %v403 = vpop.permute.xlu0 %402
      %vm404 = vcmp.lt.s32.totalorder %v268, 15
      %v405 = vsel %vm404, %v401, %v403
      %v406 = vsel %vm404, %v403, %v401
      %v407 = vperm.slane %v253, 2
      %v408 = vperm.slane %v254, 2
      %v409 = vmul.f32 %v406, %v407
      %v410 = vmul.f32 %v405, %v408
      %s411 = scalar_lea.vmem %s2, 8
      %v412 = vld [vmem:[%s411] sm:$0xf]
      %v414 = vsel %vm295, %v412, 0
      %v417 = vsel %vm299, %v409, 0
      %v420 = vsel %vm299, %v410, 0
      %422 = vmatpush.msra.mxu0 0.0
      %423 = vmatpush.msra.mxu0 0.0
      %424 = vmatpush.msra.mxu0 0.0
      %425 = vmatpush.msra.mxu0 0.0
      %426 = vmatpush.msra.mxu0 0.0
      %427 = vmatpush.msra.mxu0 0.0
      %428 = vmatpush.msra.mxu0 0.0
      %429 = vmatpush.msra.mxu0 0.0
      %430 = vmatpush.msra.mxu0 0.0
      %431 = vmatpush.msra.mxu0 0.0
      %432 = vmatpush.msra.mxu0 0.0
      %433 = vmatpush.msra.mxu0 0.0
      %434 = vmatpush.msra.mxu0 0.0
      %435 = vmatpush.msra.mxu0 0.0
      %436 = vmatpush.msra.mxu0 0.0
      %437 = vmatpush.msra.mxu0 %v417
      %438 = vmatmul.f32.gmra.mxu0 %v414
      %v439 = vpop.f32.mrf.mxu0
      %v440 = vadd.f32 0.0, %v439
      %441 = vdwg.mxu0
      %442 = vmatpush.msra.mxu0 0.0
      %443 = vmatpush.msra.mxu0 0.0
      %444 = vmatpush.msra.mxu0 0.0
      %445 = vmatpush.msra.mxu0 0.0
      %446 = vmatpush.msra.mxu0 0.0
      %447 = vmatpush.msra.mxu0 0.0
      %448 = vmatpush.msra.mxu0 0.0
      %449 = vmatpush.msra.mxu0 0.0
      %450 = vmatpush.msra.mxu0 0.0
      %451 = vmatpush.msra.mxu0 0.0
      %452 = vmatpush.msra.mxu0 0.0
      %453 = vmatpush.msra.mxu0 0.0
      %454 = vmatpush.msra.mxu0 0.0
      %455 = vmatpush.msra.mxu0 0.0
      %456 = vmatpush.msra.mxu0 0.0
      %457 = vmatpush.msra.mxu0 %v420
      %458 = vmatmul.f32.gmra.mxu0 %v414
      %v459 = vpop.f32.mrf.mxu0
      %v460 = vadd.f32 0.0, %v459
      %461 = vdwg.mxu0
      %v462 = vadd.f32 %v373, %v440
      %v463 = vadd.f32 %v393, %v460
      %464 = vst [vmem:[#allocation1] ss:$2 sm:$0xff] %v252
      %v465 = vld.sshfl [vmem:[#allocation1] sm:$0xff pattern:$0x75316420]
      %v466 = vld.sshfl [vmem:[#allocation1 + $0x8] sm:$0xff pattern:$0x75316420]
      %469 = vrot.lane.b32.xlu0 %v465, 1
      %v470 = vpop.permute.xlu0 %469
      %471 = vrot.lane.b32.xlu0 %v466, 1
      %v472 = vpop.permute.xlu0 %471
      %vm473 = vcmp.lt.s32.totalorder %v268, 1
      %v474 = vsel %vm473, %v470, %v472
      %v475 = vsel %vm473, %v472, %v470
      %v476 = vperm.slane %v253, 3
      %v477 = vperm.slane %v254, 3
      %v478 = vmul.f32 %v475, %v476
      %v479 = vmul.f32 %v474, %v477
      %s480 = scalar_lea.vmem %s2, 12
      %v481 = vld [vmem:[%s480] sm:$0xf]
      %v483 = vsel %vm295, %v481, 0
      %v486 = vsel %vm299, %v478, 0
      %v489 = vsel %vm299, %v479, 0
      %491 = vmatpush.msra.mxu0 0.0
      %492 = vmatpush.msra.mxu0 0.0
      %493 = vmatpush.msra.mxu0 0.0
      %494 = vmatpush.msra.mxu0 0.0
      %495 = vmatpush.msra.mxu0 0.0
      %496 = vmatpush.msra.mxu0 0.0
      %497 = vmatpush.msra.mxu0 0.0
      %498 = vmatpush.msra.mxu0 0.0
      %499 = vmatpush.msra.mxu0 0.0
      %500 = vmatpush.msra.mxu0 0.0
      %501 = vmatpush.msra.mxu0 0.0
      %502 = vmatpush.msra.mxu0 0.0
      %503 = vmatpush.msra.mxu0 0.0
      %504 = vmatpush.msra.mxu0 0.0
      %505 = vmatpush.msra.mxu0 0.0
      %506 = vmatpush.msra.mxu0 %v486
      %507 = vmatmul.f32.gmra.mxu0 %v483
      %v508 = vpop.f32.mrf.mxu0
      %v509 = vadd.f32 0.0, %v508
      %510 = vdwg.mxu0
      %511 = vmatpush.msra.mxu0 0.0
      %512 = vmatpush.msra.mxu0 0.0
      %513 = vmatpush.msra.mxu0 0.0
      %514 = vmatpush.msra.mxu0 0.0
      %515 = vmatpush.msra.mxu0 0.0
      %516 = vmatpush.msra.mxu0 0.0
      %517 = vmatpush.msra.mxu0 0.0
      %518 = vmatpush.msra.mxu0 0.0
      %519 = vmatpush.msra.mxu0 0.0
      %520 = vmatpush.msra.mxu0 0.0
      %521 = vmatpush.msra.mxu0 0.0
      %522 = vmatpush.msra.mxu0 0.0
      %523 = vmatpush.msra.mxu0 0.0
      %524 = vmatpush.msra.mxu0 0.0
      %525 = vmatpush.msra.mxu0 0.0
      %526 = vmatpush.msra.mxu0 %v489
      %527 = vmatmul.f32.gmra.mxu0 %v483
      %v528 = vpop.f32.mrf.mxu0
      %v529 = vadd.f32 0.0, %v528
      %530 = vdwg.mxu0
      %v531 = vadd.f32 %v462, %v509
      %v532 = vadd.f32 %v463, %v529
      %v533 = vperm.slane %v253, 4
      %v534 = vperm.slane %v254, 4
      %v537 = vrot.slane %v534, 4
      %v538 = vsel %vm299, %v533, %v537
      %v540 = vmul.f32 %v252, %v538
      %s541 = scalar_lea.vmem %s2, 16
      %v542 = vld [vmem:[%s541] sm:$0xf]
      %544 = vst [vmem:[#allocation1] ss:$2 sm:$0xff] %v540
      %v545 = vld.sshfl [vmem:[#allocation1] sm:$0xff pattern:$0x75316420]
      %v546 = vld.sshfl [vmem:[#allocation1 + $0x8] sm:$0xff pattern:$0x75316420]
      %v548 = vsel %vm295, %v542, 0
      %v550 = vsel %vm299, %v545, 0
      %v552 = vsel %vm299, %v546, 0
      %554 = vmatpush.msra.mxu0 0.0
      %555 = vmatpush.msra.mxu0 0.0
      %556 = vmatpush.msra.mxu0 0.0
      %557 = vmatpush.msra.mxu0 0.0
      %558 = vmatpush.msra.mxu0 0.0
      %559 = vmatpush.msra.mxu0 0.0
      %560 = vmatpush.msra.mxu0 0.0
      %561 = vmatpush.msra.mxu0 0.0
      %562 = vmatpush.msra.mxu0 0.0
      %563 = vmatpush.msra.mxu0 0.0
      %564 = vmatpush.msra.mxu0 0.0
      %565 = vmatpush.msra.mxu0 0.0
      %566 = vmatpush.msra.mxu0 0.0
      %567 = vmatpush.msra.mxu0 0.0
      %568 = vmatpush.msra.mxu0 0.0
      %569 = vmatpush.msra.mxu0 %v550
      %570 = vmatmul.f32.gmra.mxu0 %v548
      %v571 = vpop.f32.mrf.mxu0
      %v572 = vadd.f32 0.0, %v571
      %573 = vdwg.mxu0
      %574 = vmatpush.msra.mxu0 0.0
      %575 = vmatpush.msra.mxu0 0.0
      %576 = vmatpush.msra.mxu0 0.0
      %577 = vmatpush.msra.mxu0 0.0
      %578 = vmatpush.msra.mxu0 0.0
      %579 = vmatpush.msra.mxu0 0.0
      %580 = vmatpush.msra.mxu0 0.0
      %581 = vmatpush.msra.mxu0 0.0
      %582 = vmatpush.msra.mxu0 0.0
      %583 = vmatpush.msra.mxu0 0.0
      %584 = vmatpush.msra.mxu0 0.0
      %585 = vmatpush.msra.mxu0 0.0
      %586 = vmatpush.msra.mxu0 0.0
      %587 = vmatpush.msra.mxu0 0.0
      %588 = vmatpush.msra.mxu0 0.0
      %589 = vmatpush.msra.mxu0 %v552
      %590 = vmatmul.f32.gmra.mxu0 %v548
      %v591 = vpop.f32.mrf.mxu0
      %v592 = vadd.f32 0.0, %v591
      %593 = vdwg.mxu0
      %v594 = vadd.f32 %v531, %v572
      %v595 = vadd.f32 %v532, %v592
      %596 = vst [vmem:[#allocation1] ss:$2 sm:$0xff] %v252
      %v597 = vld.sshfl [vmem:[#allocation1] sm:$0xff pattern:$0x75316420]
      %v598 = vld.sshfl [vmem:[#allocation1 + $0x8] sm:$0xff pattern:$0x75316420]
      %601 = vrot.lane.b32.xlu0 %v597, 127
      %v602 = vpop.permute.xlu0 %601
      %603 = vrot.lane.b32.xlu0 %v598, 127
      %v604 = vpop.permute.xlu0 %603
      %vm605 = vcmp.lt.s32.totalorder %v268, 127
      %v606 = vsel %vm605, %v602, %v604
      %v607 = vsel %vm605, %v604, %v602
      %v608 = vperm.slane %v253, 5
      %v609 = vperm.slane %v254, 5
      %v610 = vmul.f32 %v606, %v608
      %v611 = vmul.f32 %v607, %v609
      %s612 = scalar_lea.vmem %s2, 20
      %v613 = vld [vmem:[%s612] sm:$0xf]
      %v615 = vsel %vm295, %v613, 0
      %v618 = vsel %vm299, %v610, 0
      %v621 = vsel %vm299, %v611, 0
      %623 = vmatpush.msra.mxu0 0.0
      %624 = vmatpush.msra.mxu0 0.0
      %625 = vmatpush.msra.mxu0 0.0
      %626 = vmatpush.msra.mxu0 0.0
      %627 = vmatpush.msra.mxu0 0.0
      %628 = vmatpush.msra.mxu0 0.0
      %629 = vmatpush.msra.mxu0 0.0
      %630 = vmatpush.msra.mxu0 0.0
      %631 = vmatpush.msra.mxu0 0.0
      %632 = vmatpush.msra.mxu0 0.0
      %633 = vmatpush.msra.mxu0 0.0
      %634 = vmatpush.msra.mxu0 0.0
      %635 = vmatpush.msra.mxu0 0.0
      %636 = vmatpush.msra.mxu0 0.0
      %637 = vmatpush.msra.mxu0 0.0
      %638 = vmatpush.msra.mxu0 %v618
      %639 = vmatmul.f32.gmra.mxu0 %v615
      %v640 = vpop.f32.mrf.mxu0
      %v641 = vadd.f32 0.0, %v640
      %642 = vdwg.mxu0
      %643 = vmatpush.msra.mxu0 0.0
      %644 = vmatpush.msra.mxu0 0.0
      %645 = vmatpush.msra.mxu0 0.0
      %646 = vmatpush.msra.mxu0 0.0
      %647 = vmatpush.msra.mxu0 0.0
      %648 = vmatpush.msra.mxu0 0.0
      %649 = vmatpush.msra.mxu0 0.0
      %650 = vmatpush.msra.mxu0 0.0
      %651 = vmatpush.msra.mxu0 0.0
      %652 = vmatpush.msra.mxu0 0.0
      %653 = vmatpush.msra.mxu0 0.0
      %654 = vmatpush.msra.mxu0 0.0
      %655 = vmatpush.msra.mxu0 0.0
      %656 = vmatpush.msra.mxu0 0.0
      %657 = vmatpush.msra.mxu0 0.0
      %658 = vmatpush.msra.mxu0 %v621
      %659 = vmatmul.f32.gmra.mxu0 %v615
      %v660 = vpop.f32.mrf.mxu0
      %v661 = vadd.f32 0.0, %v660
      %662 = vdwg.mxu0
      %v663 = vadd.f32 %v594, %v641
      %v664 = vadd.f32 %v595, %v661
      %665 = vst [vmem:[#allocation1] ss:$2 sm:$0xff] %v252
      %v666 = vld.sshfl [vmem:[#allocation1] sm:$0xff pattern:$0x75316420]
      %v667 = vld.sshfl [vmem:[#allocation1 + $0x8] sm:$0xff pattern:$0x75316420]
      %670 = vrot.lane.b32.xlu0 %v666, 113
      %v671 = vpop.permute.xlu0 %670
      %672 = vrot.lane.b32.xlu0 %v667, 113
      %v673 = vpop.permute.xlu0 %672
      %vm674 = vcmp.lt.s32.totalorder %v268, 113
      %v675 = vsel %vm674, %v671, %v673
      %v676 = vsel %vm674, %v673, %v671
      %v677 = vperm.slane %v253, 6
      %v678 = vperm.slane %v254, 6
      %v679 = vmul.f32 %v675, %v677
      %v680 = vmul.f32 %v676, %v678
      %s681 = scalar_lea.vmem %s2, 24
      %v682 = vld [vmem:[%s681] sm:$0xf]
      %v684 = vsel %vm295, %v682, 0
      %v687 = vsel %vm299, %v679, 0
      %v690 = vsel %vm299, %v680, 0
      %692 = vmatpush.msra.mxu0 0.0
      %693 = vmatpush.msra.mxu0 0.0
      %694 = vmatpush.msra.mxu0 0.0
      %695 = vmatpush.msra.mxu0 0.0
      %696 = vmatpush.msra.mxu0 0.0
      %697 = vmatpush.msra.mxu0 0.0
      %698 = vmatpush.msra.mxu0 0.0
      %699 = vmatpush.msra.mxu0 0.0
      %700 = vmatpush.msra.mxu0 0.0
      %701 = vmatpush.msra.mxu0 0.0
      %702 = vmatpush.msra.mxu0 0.0
      %703 = vmatpush.msra.mxu0 0.0
      %704 = vmatpush.msra.mxu0 0.0
      %705 = vmatpush.msra.mxu0 0.0
      %706 = vmatpush.msra.mxu0 0.0
      %707 = vmatpush.msra.mxu0 %v687
      %708 = vmatmul.f32.gmra.mxu0 %v684
      %v709 = vpop.f32.mrf.mxu0
      %v710 = vadd.f32 0.0, %v709
      %711 = vdwg.mxu0
      %712 = vmatpush.msra.mxu0 0.0
      %713 = vmatpush.msra.mxu0 0.0
      %714 = vmatpush.msra.mxu0 0.0
      %715 = vmatpush.msra.mxu0 0.0
      %716 = vmatpush.msra.mxu0 0.0
      %717 = vmatpush.msra.mxu0 0.0
      %718 = vmatpush.msra.mxu0 0.0
      %719 = vmatpush.msra.mxu0 0.0
      %720 = vmatpush.msra.mxu0 0.0
      %721 = vmatpush.msra.mxu0 0.0
      %722 = vmatpush.msra.mxu0 0.0
      %723 = vmatpush.msra.mxu0 0.0
      %724 = vmatpush.msra.mxu0 0.0
      %725 = vmatpush.msra.mxu0 0.0
      %726 = vmatpush.msra.mxu0 0.0
      %727 = vmatpush.msra.mxu0 %v690
      %728 = vmatmul.f32.gmra.mxu0 %v684
      %v729 = vpop.f32.mrf.mxu0
      %v730 = vadd.f32 0.0, %v729
      %731 = vdwg.mxu0
      %v732 = vadd.f32 %v663, %v710
      %v733 = vadd.f32 %v664, %v730
      %734 = vst [vmem:[#allocation1] ss:$2 sm:$0xff] %v252
      %v735 = vld.sshfl [vmem:[#allocation1] sm:$0xff pattern:$0x75316420]
      %v736 = vld.sshfl [vmem:[#allocation1 + $0x8] sm:$0xff pattern:$0x75316420]
      %739 = vrot.lane.b32.xlu0 %v735, 112
      %v740 = vpop.permute.xlu0 %739
      %741 = vrot.lane.b32.xlu0 %v736, 112
      %v742 = vpop.permute.xlu0 %741
      %vm743 = vcmp.lt.s32.totalorder %v268, 112
      %v744 = vsel %vm743, %v740, %v742
      %v745 = vsel %vm743, %v742, %v740
      %v746 = vperm.slane %v253, 7
      %v747 = vperm.slane %v254, 7
      %v748 = vmul.f32 %v744, %v746
      %v749 = vmul.f32 %v745, %v747
      %s750 = scalar_lea.vmem %s2, 28
      %v751 = vld [vmem:[%s750] sm:$0xf]
      %v753 = vsel %vm295, %v751, 0
      %v756 = vsel %vm299, %v748, 0
      %v759 = vsel %vm299, %v749, 0
      %761 = vmatpush.msra.mxu0 0.0
      %762 = vmatpush.msra.mxu0 0.0
      %763 = vmatpush.msra.mxu0 0.0
      %764 = vmatpush.msra.mxu0 0.0
      %765 = vmatpush.msra.mxu0 0.0
      %766 = vmatpush.msra.mxu0 0.0
      %767 = vmatpush.msra.mxu0 0.0
      %768 = vmatpush.msra.mxu0 0.0
      %769 = vmatpush.msra.mxu0 0.0
      %770 = vmatpush.msra.mxu0 0.0
      %771 = vmatpush.msra.mxu0 0.0
      %772 = vmatpush.msra.mxu0 0.0
      %773 = vmatpush.msra.mxu0 0.0
      %774 = vmatpush.msra.mxu0 0.0
      %775 = vmatpush.msra.mxu0 0.0
      %776 = vmatpush.msra.mxu0 %v756
      %777 = vmatmul.f32.gmra.mxu0 %v753
      %v778 = vpop.f32.mrf.mxu0
      %v779 = vadd.f32 0.0, %v778
      %780 = vdwg.mxu0
      %781 = vmatpush.msra.mxu0 0.0
      %782 = vmatpush.msra.mxu0 0.0
      %783 = vmatpush.msra.mxu0 0.0
      %784 = vmatpush.msra.mxu0 0.0
      %785 = vmatpush.msra.mxu0 0.0
      %786 = vmatpush.msra.mxu0 0.0
      %787 = vmatpush.msra.mxu0 0.0
      %788 = vmatpush.msra.mxu0 0.0
      %789 = vmatpush.msra.mxu0 0.0
      %790 = vmatpush.msra.mxu0 0.0
      %791 = vmatpush.msra.mxu0 0.0
      %792 = vmatpush.msra.mxu0 0.0
      %793 = vmatpush.msra.mxu0 0.0
      %794 = vmatpush.msra.mxu0 0.0
      %795 = vmatpush.msra.mxu0 0.0
      %796 = vmatpush.msra.mxu0 %v759
      %797 = vmatmul.f32.gmra.mxu0 %v753
      %v798 = vpop.f32.mrf.mxu0
      %v799 = vadd.f32 0.0, %v798
      %800 = vdwg.mxu0
      %v801 = vadd.f32 %v732, %v779
      %v802 = vadd.f32 %v733, %v799
      %803 = vst [vmem:[#allocation1] ss:$2 sm:$0xff] %v252
      %v804 = vld.sshfl [vmem:[#allocation1] sm:$0xff pattern:$0x75316420]
      %v805 = vld.sshfl [vmem:[#allocation1 + $0x8] sm:$0xff pattern:$0x75316420]
      %808 = vrot.lane.b32.xlu0 %v804, 111
      %v809 = vpop.permute.xlu0 %808
      %810 = vrot.lane.b32.xlu0 %v805, 111
      %v811 = vpop.permute.xlu0 %810
      %vm812 = vcmp.lt.s32.totalorder %v268, 111
      %v813 = vsel %vm812, %v809, %v811
      %v814 = vsel %vm812, %v811, %v809
      %v815 = vperm.slane %v255, 0
      %v816 = vperm.slane %v256, 0
      %v817 = vmul.f32 %v813, %v815
      %v818 = vmul.f32 %v814, %v816
      %s819 = scalar_lea.vmem %s2, 32
      %v820 = vld [vmem:[%s819] sm:$0xf]
      %v822 = vsel %vm295, %v820, 0
      %v825 = vsel %vm299, %v817, 0
      %v828 = vsel %vm299, %v818, 0
      %830 = vmatpush.msra.mxu0 0.0
      %831 = vmatpush.msra.mxu0 0.0
      %832 = vmatpush.msra.mxu0 0.0
      %833 = vmatpush.msra.mxu0 0.0
      %834 = vmatpush.msra.mxu0 0.0
      %835 = vmatpush.msra.mxu0 0.0
      %836 = vmatpush.msra.mxu0 0.0
      %837 = vmatpush.msra.mxu0 0.0
      %838 = vmatpush.msra.mxu0 0.0
      %839 = vmatpush.msra.mxu0 0.0
      %840 = vmatpush.msra.mxu0 0.0
      %841 = vmatpush.msra.mxu0 0.0
      %842 = vmatpush.msra.mxu0 0.0
      %843 = vmatpush.msra.mxu0 0.0
      %844 = vmatpush.msra.mxu0 0.0
      %845 = vmatpush.msra.mxu0 %v825
      %846 = vmatmul.f32.gmra.mxu0 %v822
      %v847 = vpop.f32.mrf.mxu0
      %v848 = vadd.f32 0.0, %v847
      %849 = vdwg.mxu0
      %850 = vmatpush.msra.mxu0 0.0
      %851 = vmatpush.msra.mxu0 0.0
      %852 = vmatpush.msra.mxu0 0.0
      %853 = vmatpush.msra.mxu0 0.0
      %854 = vmatpush.msra.mxu0 0.0
      %855 = vmatpush.msra.mxu0 0.0
      %856 = vmatpush.msra.mxu0 0.0
      %857 = vmatpush.msra.mxu0 0.0
      %858 = vmatpush.msra.mxu0 0.0
      %859 = vmatpush.msra.mxu0 0.0
      %860 = vmatpush.msra.mxu0 0.0
      %861 = vmatpush.msra.mxu0 0.0
      %862 = vmatpush.msra.mxu0 0.0
      %863 = vmatpush.msra.mxu0 0.0
      %864 = vmatpush.msra.mxu0 0.0
      %865 = vmatpush.msra.mxu0 %v828
      %866 = vmatmul.f32.gmra.mxu0 %v822
      %v867 = vpop.f32.mrf.mxu0
      %v868 = vadd.f32 0.0, %v867
      %869 = vdwg.mxu0
      %v870 = vadd.f32 %v801, %v848
      %v871 = vadd.f32 %v802, %v868
      %v872 = vld [vmem:[%s3] sm:$0xf]
      %874 = vset.pattern.permute.xlu0 0
      %875 = vperm.xlu0 %874, %v872
      %v876 = vpop.permute.xlu0 %875
      %v878 = vadd.f32 %v870, %v876
      %v879 = vadd.f32 %v871, %v876
      %v880 = vmax.f32 %v878, 0.0
      %v881 = vmax.f32 %v879, 0.0
      %882 = vrot.lane.b32.xlu0 %v880, 17
      %v883 = vpop.permute.xlu0 %882
      %884 = vrot.lane.b32.xlu0 %v881, 17
      %v885 = vpop.permute.xlu0 %884
      %v886 = vsel %vm269, %v883, %v885
      %v887 = vsel %vm269, %v885, %v883
      %v888 = vmul.f32 %v887, %v272
      %v889 = vmul.f32 %v886, %v273
      %v890 = vld [vmem:[%s4] sm:$0xf]
      %891 = vrot.lane.b32.xlu0 %v880, 16
      %v892 = vpop.permute.xlu0 %891
      %893 = vrot.lane.b32.xlu0 %v881, 16
      %v894 = vpop.permute.xlu0 %893
      %v895 = vsel %vm286, %v892, %v894
      %v896 = vsel %vm286, %v894, %v892
      %v897 = vmul.f32 %v896, %v289
      %v898 = vmul.f32 %v895, %v290
      %s899 = scalar_lea.vmem %s4, 4
      %v900 = vld [vmem:[%s899] sm:$0xf]
      %v902 = vsel %vm295, %v900, 0
      %v905 = vsel %vm299, %v897, 0
      %v908 = vsel %vm299, %v898, 0
      %910 = vmatpush.msra.mxu0 0.0
      %911 = vmatpush.msra.mxu0 0.0
      %912 = vmatpush.msra.mxu0 0.0
      %913 = vmatpush.msra.mxu0 0.0
      %914 = vmatpush.msra.mxu0 0.0
      %915 = vmatpush.msra.mxu0 0.0
      %916 = vmatpush.msra.mxu0 0.0
      %917 = vmatpush.msra.mxu0 0.0
      %918 = vmatpush.msra.mxu0 0.0
      %919 = vmatpush.msra.mxu0 0.0
      %920 = vmatpush.msra.mxu0 0.0
      %921 = vmatpush.msra.mxu0 0.0
      %922 = vmatpush.msra.mxu0 0.0
      %923 = vmatpush.msra.mxu0 0.0
      %924 = vmatpush.msra.mxu0 0.0
      %925 = vmatpush.msra.mxu0 %v905
      %926 = vmatmul.f32.gmra.mxu0 %v902
      %v927 = vpop.f32.mrf.mxu0
      %v928 = vadd.f32 0.0, %v927
      %929 = vdwg.mxu0
      %930 = vmatpush.msra.mxu0 0.0
      %931 = vmatpush.msra.mxu0 0.0
      %932 = vmatpush.msra.mxu0 0.0
      %933 = vmatpush.msra.mxu0 0.0
      %934 = vmatpush.msra.mxu0 0.0
      %935 = vmatpush.msra.mxu0 0.0
      %936 = vmatpush.msra.mxu0 0.0
      %937 = vmatpush.msra.mxu0 0.0
      %938 = vmatpush.msra.mxu0 0.0
      %939 = vmatpush.msra.mxu0 0.0
      %940 = vmatpush.msra.mxu0 0.0
      %941 = vmatpush.msra.mxu0 0.0
      %942 = vmatpush.msra.mxu0 0.0
      %943 = vmatpush.msra.mxu0 0.0
      %944 = vmatpush.msra.mxu0 0.0
      %945 = vmatpush.msra.mxu0 %v908
      %946 = vmatmul.f32.gmra.mxu0 %v902
      %v947 = vpop.f32.mrf.mxu0
      %v948 = vadd.f32 0.0, %v947
      %949 = vdwg.mxu0
      %v951 = vsel %vm295, %v890, 0
      %v954 = vsel %vm299, %v888, 0
      %v957 = vsel %vm299, %v889, 0
      %959 = vmatpush.msra.mxu0 0.0
      %960 = vmatpush.msra.mxu0 0.0
      %961 = vmatpush.msra.mxu0 0.0
      %962 = vmatpush.msra.mxu0 0.0
      %963 = vmatpush.msra.mxu0 0.0
      %964 = vmatpush.msra.mxu0 0.0
      %965 = vmatpush.msra.mxu0 0.0
      %966 = vmatpush.msra.mxu0 0.0
      %967 = vmatpush.msra.mxu0 0.0
      %968 = vmatpush.msra.mxu0 0.0
      %969 = vmatpush.msra.mxu0 0.0
      %970 = vmatpush.msra.mxu0 0.0
      %971 = vmatpush.msra.mxu0 0.0
      %972 = vmatpush.msra.mxu0 0.0
      %973 = vmatpush.msra.mxu0 0.0
      %974 = vmatpush.msra.mxu0 %v954
      %975 = vmatmul.f32.gmra.mxu0 %v951
      %v976 = vpop.f32.mrf.mxu0
      %v977 = vadd.f32 %v928, %v976
      %978 = vdwg.mxu0
      %979 = vmatpush.msra.mxu0 0.0
      %980 = vmatpush.msra.mxu0 0.0
      %981 = vmatpush.msra.mxu0 0.0
      %982 = vmatpush.msra.mxu0 0.0
      %983 = vmatpush.msra.mxu0 0.0
      %984 = vmatpush.msra.mxu0 0.0
      %985 = vmatpush.msra.mxu0 0.0
      %986 = vmatpush.msra.mxu0 0.0
      %987 = vmatpush.msra.mxu0 0.0
      %988 = vmatpush.msra.mxu0 0.0
      %989 = vmatpush.msra.mxu0 0.0
      %990 = vmatpush.msra.mxu0 0.0
      %991 = vmatpush.msra.mxu0 0.0
      %992 = vmatpush.msra.mxu0 0.0
      %993 = vmatpush.msra.mxu0 0.0
      %994 = vmatpush.msra.mxu0 %v957
      %995 = vmatmul.f32.gmra.mxu0 %v951
      %v996 = vpop.f32.mrf.mxu0
      %v997 = vadd.f32 %v948, %v996
      %998 = vdwg.mxu0
      %999 = vrot.lane.b32.xlu0 %v880, 15
      %v1000 = vpop.permute.xlu0 %999
      %1001 = vrot.lane.b32.xlu0 %v881, 15
      %v1002 = vpop.permute.xlu0 %1001
      %v1003 = vsel %vm404, %v1000, %v1002
      %v1004 = vsel %vm404, %v1002, %v1000
      %v1005 = vmul.f32 %v1004, %v407
      %v1006 = vmul.f32 %v1003, %v408
      %s1007 = scalar_lea.vmem %s4, 8
      %v1008 = vld [vmem:[%s1007] sm:$0xf]
      %v1010 = vsel %vm295, %v1008, 0
      %v1013 = vsel %vm299, %v1005, 0
      %v1016 = vsel %vm299, %v1006, 0
      %1018 = vmatpush.msra.mxu0 0.0
      %1019 = vmatpush.msra.mxu0 0.0
      %1020 = vmatpush.msra.mxu0 0.0
      %1021 = vmatpush.msra.mxu0 0.0
      %1022 = vmatpush.msra.mxu0 0.0
      %1023 = vmatpush.msra.mxu0 0.0
      %1024 = vmatpush.msra.mxu0 0.0
      %1025 = vmatpush.msra.mxu0 0.0
      %1026 = vmatpush.msra.mxu0 0.0
      %1027 = vmatpush.msra.mxu0 0.0
      %1028 = vmatpush.msra.mxu0 0.0
      %1029 = vmatpush.msra.mxu0 0.0
      %1030 = vmatpush.msra.mxu0 0.0
      %1031 = vmatpush.msra.mxu0 0.0
      %1032 = vmatpush.msra.mxu0 0.0
      %1033 = vmatpush.msra.mxu0 %v1013
      %1034 = vmatmul.f32.gmra.mxu0 %v1010
      %v1035 = vpop.f32.mrf.mxu0
      %v1036 = vadd.f32 0.0, %v1035
      %1037 = vdwg.mxu0
      %1038 = vmatpush.msra.mxu0 0.0
      %1039 = vmatpush.msra.mxu0 0.0
      %1040 = vmatpush.msra.mxu0 0.0
      %1041 = vmatpush.msra.mxu0 0.0
      %1042 = vmatpush.msra.mxu0 0.0
      %1043 = vmatpush.msra.mxu0 0.0
      %1044 = vmatpush.msra.mxu0 0.0
      %1045 = vmatpush.msra.mxu0 0.0
      %1046 = vmatpush.msra.mxu0 0.0
      %1047 = vmatpush.msra.mxu0 0.0
      %1048 = vmatpush.msra.mxu0 0.0
      %1049 = vmatpush.msra.mxu0 0.0
      %1050 = vmatpush.msra.mxu0 0.0
      %1051 = vmatpush.msra.mxu0 0.0
      %1052 = vmatpush.msra.mxu0 0.0
      %1053 = vmatpush.msra.mxu0 %v1016
      %1054 = vmatmul.f32.gmra.mxu0 %v1010
      %v1055 = vpop.f32.mrf.mxu0
      %v1056 = vadd.f32 0.0, %v1055
      %1057 = vdwg.mxu0
      %v1058 = vadd.f32 %v977, %v1036
      %v1059 = vadd.f32 %v997, %v1056
      %1060 = vrot.lane.b32.xlu0 %v880, 1
      %v1061 = vpop.permute.xlu0 %1060
      %1062 = vrot.lane.b32.xlu0 %v881, 1
      %v1063 = vpop.permute.xlu0 %1062
      %v1064 = vsel %vm473, %v1061, %v1063
      %v1065 = vsel %vm473, %v1063, %v1061
      %v1066 = vmul.f32 %v1065, %v476
      %v1067 = vmul.f32 %v1064, %v477
      %s1068 = scalar_lea.vmem %s4, 12
      %v1069 = vld [vmem:[%s1068] sm:$0xf]
      %v1071 = vsel %vm295, %v1069, 0
      %v1074 = vsel %vm299, %v1066, 0
      %v1077 = vsel %vm299, %v1067, 0
      %1079 = vmatpush.msra.mxu0 0.0
      %1080 = vmatpush.msra.mxu0 0.0
      %1081 = vmatpush.msra.mxu0 0.0
      %1082 = vmatpush.msra.mxu0 0.0
      %1083 = vmatpush.msra.mxu0 0.0
      %1084 = vmatpush.msra.mxu0 0.0
      %1085 = vmatpush.msra.mxu0 0.0
      %1086 = vmatpush.msra.mxu0 0.0
      %1087 = vmatpush.msra.mxu0 0.0
      %1088 = vmatpush.msra.mxu0 0.0
      %1089 = vmatpush.msra.mxu0 0.0
      %1090 = vmatpush.msra.mxu0 0.0
      %1091 = vmatpush.msra.mxu0 0.0
      %1092 = vmatpush.msra.mxu0 0.0
      %1093 = vmatpush.msra.mxu0 0.0
      %1094 = vmatpush.msra.mxu0 %v1074
      %1095 = vmatmul.f32.gmra.mxu0 %v1071
      %v1096 = vpop.f32.mrf.mxu0
      %v1097 = vadd.f32 0.0, %v1096
      %1098 = vdwg.mxu0
      %1099 = vmatpush.msra.mxu0 0.0
      %1100 = vmatpush.msra.mxu0 0.0
      %1101 = vmatpush.msra.mxu0 0.0
      %1102 = vmatpush.msra.mxu0 0.0
      %1103 = vmatpush.msra.mxu0 0.0
      %1104 = vmatpush.msra.mxu0 0.0
      %1105 = vmatpush.msra.mxu0 0.0
      %1106 = vmatpush.msra.mxu0 0.0
      %1107 = vmatpush.msra.mxu0 0.0
      %1108 = vmatpush.msra.mxu0 0.0
      %1109 = vmatpush.msra.mxu0 0.0
      %1110 = vmatpush.msra.mxu0 0.0
      %1111 = vmatpush.msra.mxu0 0.0
      %1112 = vmatpush.msra.mxu0 0.0
      %1113 = vmatpush.msra.mxu0 0.0
      %1114 = vmatpush.msra.mxu0 %v1077
      %1115 = vmatmul.f32.gmra.mxu0 %v1071
      %v1116 = vpop.f32.mrf.mxu0
      %v1117 = vadd.f32 0.0, %v1116
      %1118 = vdwg.mxu0
      %v1119 = vadd.f32 %v1058, %v1097
      %v1120 = vadd.f32 %v1059, %v1117
      %v1121 = vmul.f32 %v880, %v533
      %v1122 = vmul.f32 %v881, %v534
      %s1123 = scalar_lea.vmem %s4, 16
      %v1124 = vld [vmem:[%s1123] sm:$0xf]
      %v1126 = vsel %vm295, %v1124, 0
      %v1129 = vsel %vm299, %v1121, 0
      %v1132 = vsel %vm299, %v1122, 0
      %1134 = vmatpush.msra.mxu0 0.0
      %1135 = vmatpush.msra.mxu0 0.0
      %1136 = vmatpush.msra.mxu0 0.0
      %1137 = vmatpush.msra.mxu0 0.0
      %1138 = vmatpush.msra.mxu0 0.0
      %1139 = vmatpush.msra.mxu0 0.0
      %1140 = vmatpush.msra.mxu0 0.0
      %1141 = vmatpush.msra.mxu0 0.0
      %1142 = vmatpush.msra.mxu0 0.0
      %1143 = vmatpush.msra.mxu0 0.0
      %1144 = vmatpush.msra.mxu0 0.0
      %1145 = vmatpush.msra.mxu0 0.0
      %1146 = vmatpush.msra.mxu0 0.0
      %1147 = vmatpush.msra.mxu0 0.0
      %1148 = vmatpush.msra.mxu0 0.0
      %1149 = vmatpush.msra.mxu0 %v1129
      %1150 = vmatmul.f32.gmra.mxu0 %v1126
      %v1151 = vpop.f32.mrf.mxu0
      %v1152 = vadd.f32 0.0, %v1151
      %1153 = vdwg.mxu0
      %1154 = vmatpush.msra.mxu0 0.0
      %1155 = vmatpush.msra.mxu0 0.0
      %1156 = vmatpush.msra.mxu0 0.0
      %1157 = vmatpush.msra.mxu0 0.0
      %1158 = vmatpush.msra.mxu0 0.0
      %1159 = vmatpush.msra.mxu0 0.0
      %1160 = vmatpush.msra.mxu0 0.0
      %1161 = vmatpush.msra.mxu0 0.0
      %1162 = vmatpush.msra.mxu0 0.0
      %1163 = vmatpush.msra.mxu0 0.0
      %1164 = vmatpush.msra.mxu0 0.0
      %1165 = vmatpush.msra.mxu0 0.0
      %1166 = vmatpush.msra.mxu0 0.0
      %1167 = vmatpush.msra.mxu0 0.0
      %1168 = vmatpush.msra.mxu0 0.0
      %1169 = vmatpush.msra.mxu0 %v1132
      %1170 = vmatmul.f32.gmra.mxu0 %v1126
      %v1171 = vpop.f32.mrf.mxu0
      %v1172 = vadd.f32 0.0, %v1171
      %1173 = vdwg.mxu0
      %v1174 = vadd.f32 %v1119, %v1152
      %v1175 = vadd.f32 %v1120, %v1172
      %1176 = vrot.lane.b32.xlu0 %v880, 127
      %v1177 = vpop.permute.xlu0 %1176
      %1178 = vrot.lane.b32.xlu0 %v881, 127
      %v1179 = vpop.permute.xlu0 %1178
      %v1180 = vsel %vm605, %v1177, %v1179
      %v1181 = vsel %vm605, %v1179, %v1177
      %v1182 = vmul.f32 %v1180, %v608
      %v1183 = vmul.f32 %v1181, %v609
      %s1184 = scalar_lea.vmem %s4, 20
      %v1185 = vld [vmem:[%s1184] sm:$0xf]
      %v1187 = vsel %vm295, %v1185, 0
      %v1190 = vsel %vm299, %v1182, 0
      %v1193 = vsel %vm299, %v1183, 0
      %1195 = vmatpush.msra.mxu0 0.0
      %1196 = vmatpush.msra.mxu0 0.0
      %1197 = vmatpush.msra.mxu0 0.0
      %1198 = vmatpush.msra.mxu0 0.0
      %1199 = vmatpush.msra.mxu0 0.0
      %1200 = vmatpush.msra.mxu0 0.0
      %1201 = vmatpush.msra.mxu0 0.0
      %1202 = vmatpush.msra.mxu0 0.0
      %1203 = vmatpush.msra.mxu0 0.0
      %1204 = vmatpush.msra.mxu0 0.0
      %1205 = vmatpush.msra.mxu0 0.0
      %1206 = vmatpush.msra.mxu0 0.0
      %1207 = vmatpush.msra.mxu0 0.0
      %1208 = vmatpush.msra.mxu0 0.0
      %1209 = vmatpush.msra.mxu0 0.0
      %1210 = vmatpush.msra.mxu0 %v1190
      %1211 = vmatmul.f32.gmra.mxu0 %v1187
      %v1212 = vpop.f32.mrf.mxu0
      %v1213 = vadd.f32 0.0, %v1212
      %1214 = vdwg.mxu0
      %1215 = vmatpush.msra.mxu0 0.0
      %1216 = vmatpush.msra.mxu0 0.0
      %1217 = vmatpush.msra.mxu0 0.0
      %1218 = vmatpush.msra.mxu0 0.0
      %1219 = vmatpush.msra.mxu0 0.0
      %1220 = vmatpush.msra.mxu0 0.0
      %1221 = vmatpush.msra.mxu0 0.0
      %1222 = vmatpush.msra.mxu0 0.0
      %1223 = vmatpush.msra.mxu0 0.0
      %1224 = vmatpush.msra.mxu0 0.0
      %1225 = vmatpush.msra.mxu0 0.0
      %1226 = vmatpush.msra.mxu0 0.0
      %1227 = vmatpush.msra.mxu0 0.0
      %1228 = vmatpush.msra.mxu0 0.0
      %1229 = vmatpush.msra.mxu0 0.0
      %1230 = vmatpush.msra.mxu0 %v1193
      %1231 = vmatmul.f32.gmra.mxu0 %v1187
      %v1232 = vpop.f32.mrf.mxu0
      %v1233 = vadd.f32 0.0, %v1232
      %1234 = vdwg.mxu0
      %v1235 = vadd.f32 %v1174, %v1213
      %v1236 = vadd.f32 %v1175, %v1233
      %1237 = vrot.lane.b32.xlu0 %v880, 113
      %v1238 = vpop.permute.xlu0 %1237
      %1239 = vrot.lane.b32.xlu0 %v881, 113
      %v1240 = vpop.permute.xlu0 %1239
      %v1241 = vsel %vm674, %v1238, %v1240
      %v1242 = vsel %vm674, %v1240, %v1238
      %v1243 = vmul.f32 %v1241, %v677
      %v1244 = vmul.f32 %v1242, %v678
      %s1245 = scalar_lea.vmem %s4, 24
      %v1246 = vld [vmem:[%s1245] sm:$0xf]
      %v1248 = vsel %vm295, %v1246, 0
      %v1251 = vsel %vm299, %v1243, 0
      %v1254 = vsel %vm299, %v1244, 0
      %1256 = vmatpush.msra.mxu0 0.0
      %1257 = vmatpush.msra.mxu0 0.0
      %1258 = vmatpush.msra.mxu0 0.0
      %1259 = vmatpush.msra.mxu0 0.0
      %1260 = vmatpush.msra.mxu0 0.0
      %1261 = vmatpush.msra.mxu0 0.0
      %1262 = vmatpush.msra.mxu0 0.0
      %1263 = vmatpush.msra.mxu0 0.0
      %1264 = vmatpush.msra.mxu0 0.0
      %1265 = vmatpush.msra.mxu0 0.0
      %1266 = vmatpush.msra.mxu0 0.0
      %1267 = vmatpush.msra.mxu0 0.0
      %1268 = vmatpush.msra.mxu0 0.0
      %1269 = vmatpush.msra.mxu0 0.0
      %1270 = vmatpush.msra.mxu0 0.0
      %1271 = vmatpush.msra.mxu0 %v1251
      %1272 = vmatmul.f32.gmra.mxu0 %v1248
      %v1273 = vpop.f32.mrf.mxu0
      %v1274 = vadd.f32 0.0, %v1273
      %1275 = vdwg.mxu0
      %1276 = vmatpush.msra.mxu0 0.0
      %1277 = vmatpush.msra.mxu0 0.0
      %1278 = vmatpush.msra.mxu0 0.0
      %1279 = vmatpush.msra.mxu0 0.0
      %1280 = vmatpush.msra.mxu0 0.0
      %1281 = vmatpush.msra.mxu0 0.0
      %1282 = vmatpush.msra.mxu0 0.0
      %1283 = vmatpush.msra.mxu0 0.0
      %1284 = vmatpush.msra.mxu0 0.0
      %1285 = vmatpush.msra.mxu0 0.0
      %1286 = vmatpush.msra.mxu0 0.0
      %1287 = vmatpush.msra.mxu0 0.0
      %1288 = vmatpush.msra.mxu0 0.0
      %1289 = vmatpush.msra.mxu0 0.0
      %1290 = vmatpush.msra.mxu0 0.0
      %1291 = vmatpush.msra.mxu0 %v1254
      %1292 = vmatmul.f32.gmra.mxu0 %v1248
      %v1293 = vpop.f32.mrf.mxu0
      %v1294 = vadd.f32 0.0, %v1293
      %1295 = vdwg.mxu0
      %v1296 = vadd.f32 %v1235, %v1274
      %v1297 = vadd.f32 %v1236, %v1294
      %1298 = vrot.lane.b32.xlu0 %v880, 112
      %v1299 = vpop.permute.xlu0 %1298
      %1300 = vrot.lane.b32.xlu0 %v881, 112
      %v1301 = vpop.permute.xlu0 %1300
      %v1302 = vsel %vm743, %v1299, %v1301
      %v1303 = vsel %vm743, %v1301, %v1299
      %v1304 = vmul.f32 %v1302, %v746
      %v1305 = vmul.f32 %v1303, %v747
      %s1306 = scalar_lea.vmem %s4, 28
      %v1307 = vld [vmem:[%s1306] sm:$0xf]
      %v1309 = vsel %vm295, %v1307, 0
      %v1312 = vsel %vm299, %v1304, 0
      %v1315 = vsel %vm299, %v1305, 0
      %1317 = vmatpush.msra.mxu0 0.0
      %1318 = vmatpush.msra.mxu0 0.0
      %1319 = vmatpush.msra.mxu0 0.0
      %1320 = vmatpush.msra.mxu0 0.0
      %1321 = vmatpush.msra.mxu0 0.0
      %1322 = vmatpush.msra.mxu0 0.0
      %1323 = vmatpush.msra.mxu0 0.0
      %1324 = vmatpush.msra.mxu0 0.0
      %1325 = vmatpush.msra.mxu0 0.0
      %1326 = vmatpush.msra.mxu0 0.0
      %1327 = vmatpush.msra.mxu0 0.0
      %1328 = vmatpush.msra.mxu0 0.0
      %1329 = vmatpush.msra.mxu0 0.0
      %1330 = vmatpush.msra.mxu0 0.0
      %1331 = vmatpush.msra.mxu0 0.0
      %1332 = vmatpush.msra.mxu0 %v1312
      %1333 = vmatmul.f32.gmra.mxu0 %v1309
      %v1334 = vpop.f32.mrf.mxu0
      %v1335 = vadd.f32 0.0, %v1334
      %1336 = vdwg.mxu0
      %1337 = vmatpush.msra.mxu0 0.0
      %1338 = vmatpush.msra.mxu0 0.0
      %1339 = vmatpush.msra.mxu0 0.0
      %1340 = vmatpush.msra.mxu0 0.0
      %1341 = vmatpush.msra.mxu0 0.0
      %1342 = vmatpush.msra.mxu0 0.0
      %1343 = vmatpush.msra.mxu0 0.0
      %1344 = vmatpush.msra.mxu0 0.0
      %1345 = vmatpush.msra.mxu0 0.0
      %1346 = vmatpush.msra.mxu0 0.0
      %1347 = vmatpush.msra.mxu0 0.0
      %1348 = vmatpush.msra.mxu0 0.0
      %1349 = vmatpush.msra.mxu0 0.0
      %1350 = vmatpush.msra.mxu0 0.0
      %1351 = vmatpush.msra.mxu0 0.0
      %1352 = vmatpush.msra.mxu0 %v1315
      %1353 = vmatmul.f32.gmra.mxu0 %v1309
      %v1354 = vpop.f32.mrf.mxu0
      %v1355 = vadd.f32 0.0, %v1354
      %1356 = vdwg.mxu0
      %v1357 = vadd.f32 %v1296, %v1335
      %v1358 = vadd.f32 %v1297, %v1355
      %1359 = vrot.lane.b32.xlu0 %v880, 111
      %v1360 = vpop.permute.xlu0 %1359
      %1361 = vrot.lane.b32.xlu0 %v881, 111
      %v1362 = vpop.permute.xlu0 %1361
      %v1363 = vsel %vm812, %v1360, %v1362
      %v1364 = vsel %vm812, %v1362, %v1360
      %v1365 = vmul.f32 %v1363, %v815
      %v1366 = vmul.f32 %v1364, %v816
      %s1367 = scalar_lea.vmem %s4, 32
      %v1368 = vld [vmem:[%s1367] sm:$0xf]
      %v1370 = vsel %vm295, %v1368, 0
      %v1373 = vsel %vm299, %v1365, 0
      %v1376 = vsel %vm299, %v1366, 0
      %1378 = vmatpush.msra.mxu0 0.0
      %1379 = vmatpush.msra.mxu0 0.0
      %1380 = vmatpush.msra.mxu0 0.0
      %1381 = vmatpush.msra.mxu0 0.0
      %1382 = vmatpush.msra.mxu0 0.0
      %1383 = vmatpush.msra.mxu0 0.0
      %1384 = vmatpush.msra.mxu0 0.0
      %1385 = vmatpush.msra.mxu0 0.0
      %1386 = vmatpush.msra.mxu0 0.0
      %1387 = vmatpush.msra.mxu0 0.0
      %1388 = vmatpush.msra.mxu0 0.0
      %1389 = vmatpush.msra.mxu0 0.0
      %1390 = vmatpush.msra.mxu0 0.0
      %1391 = vmatpush.msra.mxu0 0.0
      %1392 = vmatpush.msra.mxu0 0.0
      %1393 = vmatpush.msra.mxu0 %v1373
      %1394 = vmatmul.f32.gmra.mxu0 %v1370
      %v1395 = vpop.f32.mrf.mxu0
      %v1396 = vadd.f32 0.0, %v1395
      %1397 = vdwg.mxu0
      %1398 = vmatpush.msra.mxu0 0.0
      %1399 = vmatpush.msra.mxu0 0.0
      %1400 = vmatpush.msra.mxu0 0.0
      %1401 = vmatpush.msra.mxu0 0.0
      %1402 = vmatpush.msra.mxu0 0.0
      %1403 = vmatpush.msra.mxu0 0.0
      %1404 = vmatpush.msra.mxu0 0.0
      %1405 = vmatpush.msra.mxu0 0.0
      %1406 = vmatpush.msra.mxu0 0.0
      %1407 = vmatpush.msra.mxu0 0.0
      %1408 = vmatpush.msra.mxu0 0.0
      %1409 = vmatpush.msra.mxu0 0.0
      %1410 = vmatpush.msra.mxu0 0.0
      %1411 = vmatpush.msra.mxu0 0.0
      %1412 = vmatpush.msra.mxu0 0.0
      %1413 = vmatpush.msra.mxu0 %v1376
      %1414 = vmatmul.f32.gmra.mxu0 %v1370
      %v1415 = vpop.f32.mrf.mxu0
      %v1416 = vadd.f32 0.0, %v1415
      %1417 = vdwg.mxu0
      %v1418 = vadd.f32 %v1357, %v1396
      %v1419 = vadd.f32 %v1358, %v1416
      %v1420 = vld [vmem:[%s5] sm:$0xf]
      %1422 = vset.pattern.permute.xlu0 0
      %1423 = vperm.xlu0 %1422, %v1420
      %v1424 = vpop.permute.xlu0 %1423
      %v1426 = vadd.f32 %v1418, %v1424
      %v1427 = vadd.f32 %v1419, %v1424
      %v1430 = vrot.slane %v1427, 4
      %v1431 = vsel %vm299, %v1426, %v1430
      %v1433 = vadd.f32 %v252, %v1431
      %v1434 = vmax.f32 %v1433, 0.0
      %1435 = vst [vmem:[%s251] sm:$0xff] %v1434
      %p1436 = scmp.lt.s32.totalorder %s17, 1
      %s1437 = scalar_select %p1436, %s17, 1
      %s1438 = smul.addr %s1437, 2
      %s1439 = smul.addr %s1438, 4
      %s1440 = scalar_lea.vmem %s6, %s1439
      // Predicated region
      $region45: #{residual_block.1} parent=43 // pred_check
        %p1441 = pneg %p166
      $region46: #{residual_block.1} parent=43 // pred_check_branch
        %1443 = sbr.rel (%p1441) target = $region48
      $region47: #{residual_block.1} parent=43 // pred_region
        _
      $region48: #{residual_block.1} parent=43 // pred_fallthru
        _
    $region44: #{residual_block.1} parent=5 // pred_fallthru
      _
    %p1444 = scmp.le.s32.totalorder 2, %s12
    // Predicated region
    $region49: #{residual_block.1} parent=5 // pred_check
      %p1445 = pneg %p1444
    $region50: #{residual_block.1} parent=5 // pred_check_branch
      %1447 = sbr.rel (%p1445) target = $region52
    $region51: #{residual_block.1} parent=5 // pred_region
      %s1448 = ssub.s32 %s12, 2
      // Predicated region
      $region53: #{residual_block.1} parent=51 // pred_check
        %p1449 = pneg %p172
      $region54: #{residual_block.1} parent=51 // pred_check_branch
        %1451 = sbr.rel (%p1449) target = $region56
      $region55: #{residual_block.1} parent=51 // pred_region
        %p1452 = scmp.lt.s32.totalorder %s18, 1
        %s1453 = scalar_select %p1452, %s18, 1
        %s1454 = smul.addr %s1453, 2
        %s1455 = smul.addr %s1454, 4
        %s1456 = scalar_lea.vmem %s6, %s1455
      $region56: #{residual_block.1} parent=51 // pred_fallthru
        _
    $region52: #{residual_block.1} parent=5 // pred_fallthru
      _
  $region6: #{residual_block.1} parent=0 // loop_footer
    %s16 = sadd.s32 1, %s12
  $region7: #{residual_block.1} parent=0 // loop_footer_branch
    %11 = sbr.rel target = $region3
  $region8: #{residual_block.1} parent=0 // loop_exit
    _

</llo_original>
